<compile_context>
chip_gen: v7x
topology: tpu7x:2x2x1
jax: 0.10.0
libtpu: 0.0.40
codegen_flags: <defaults>
</compile_context>

<pallas_src>
import jax
import jax.numpy as jnp
from jax.experimental import pallas as pl
from jax.experimental.pallas import tpu as pltpu


def _lstm_recurrence_kernel(xlen_ref, gx_ref, whh_ref, wd_ref, bd_ref,
                            out_ref, h_scr, c_scr):
    """Sequential LSTM recurrence over one time-chunk + final dense.

    gx_ref : (Tc, Bb, 4H) f32  precomputed x@W_ih^T + b (hoisted big GEMM)
    whh_ref: (H, 4H)      bf16
    wd_ref : (H, O_pad)   bf16
    bd_ref : (1, O_pad)   f32
    xlen_ref:(Bb, 1)      int32
    """
    t_chunk = pl.program_id(1)
    Tc = gx_ref.shape[0]
    H = h_scr.shape[-1]

    @pl.when(t_chunk == 0)
    def _():
        h_scr[...] = jnp.zeros_like(h_scr)
        c_scr[...] = jnp.zeros_like(c_scr)

    whh = whh_ref[...]           # resident (H, 4H) bf16
    xlen = xlen_ref[...]         # (Bb, 1) int32
    t0 = t_chunk * Tc

    def step(t, carry):
        h, c = carry
        # serial part only: h @ W_hh^T (bf16 MXU, f32 accumulate) + streamed gates_x
        gates = gx_ref[t] + jnp.dot(h.astype(whh.dtype), whh,
                                    preferred_element_type=jnp.float32)  # (Bb,4H)
        # full-vreg activations (one sigmoid pass + one tanh pass over 4H lanes)
        sig = jax.nn.sigmoid(gates)
        tnh = jnp.tanh(gates)
        i_g = sig[:, 0 * H:1 * H]
        f_g = sig[:, 1 * H:2 * H]
        g_g = tnh[:, 2 * H:3 * H]
        o_g = sig[:, 3 * H:4 * H]
        c_new = f_g * c + i_g * g_g
        h_new = o_g * jnp.tanh(c_new)
        # packed-sequence semantics: state frozen once t >= x_len[b]
        live = (t0 + t) < xlen                     # (Bb, 1) bool
        return jnp.where(live, h_new, h), jnp.where(live, c_new, c)

    h, c = jax.lax.fori_loop(0, Tc, step, (h_scr[...], c_scr[...]),
                             unroll=True)
    h_scr[...] = h
    c_scr[...] = c

    @pl.when(t_chunk == pl.num_programs(1) - 1)
    def _():
        out_ref[...] = (jnp.dot(h.astype(wd_ref.dtype), wd_ref[...],
                                preferred_element_type=jnp.float32)
                        + bd_ref[...])


@jax.jit
def lstm_forward(text_indices, embedding_matrix, w_ih_t, w_hh_t, b_gates,
                 w_dense_t, b_dense):
    """text_indices: (B, T) int32. Returns (B, output_dim) float32."""
    B, T = text_indices.shape
    H = w_hh_t.shape[0]
    O = w_dense_t.shape[1]

    TIME_CHUNK = 32
    Tc = T if T <= TIME_CHUNK else TIME_CHUNK
    T_pad = pl.cdiv(T, Tc) * Tc
    nt = T_pad // Tc

    # batch-parallel leading grid axis (lets v7x's 2 TCs split the batch)
    nb = 2 if (B % 16 == 0) else 1
    Bb = B // nb

    # ---- glue (XLA): embedding lookup, lengths, hoisted input projection ----
    x = jnp.take(embedding_matrix, text_indices, axis=0)               # (B,T,E) f32
    x_len = jnp.sum((text_indices != 0).astype(jnp.int32), axis=-1)    # (B,)
    x_tm = jnp.transpose(x, (1, 0, 2)).astype(jnp.bfloat16)            # (T,B,E) bf16
    # one big MXU-friendly GEMM, hoisted out of the sequential recurrence
    gx = (jnp.einsum("tbe,eg->tbg", x_tm, w_ih_t.astype(jnp.bfloat16),
                     preferred_element_type=jnp.float32)
          + b_gates.astype(jnp.float32))                               # (T,B,4H) f32
    if T_pad != T:
        gx = jnp.pad(gx, ((0, T_pad - T), (0, 0), (0, 0)))             # frozen past x_len

    # lane-dense final store: pad output dim up to a multiple of 128
    O_pad = pl.cdiv(O, 128) * 128
    wd = jnp.zeros((H, O_pad), jnp.bfloat16).at[:, :O].set(
        w_dense_t.astype(jnp.bfloat16))
    bd = jnp.zeros((1, O_pad), jnp.float32).at[:, :O].set(b_dense)

    out = pl.pallas_call(
        _lstm_recurrence_kernel,
        out_shape=jax.ShapeDtypeStruct((B, O_pad), jnp.float32),
        grid_spec=pltpu.PrefetchScalarGridSpec(
            num_scalar_prefetch=0,
            grid=(nb, nt),
            in_specs=[
                pl.BlockSpec((Bb, 1), lambda b, t: (b, 0)),              # x_len
                pl.BlockSpec((Tc, Bb, 4 * H), lambda b, t: (t, b, 0)),   # gates_x chunk
                pl.BlockSpec((H, 4 * H), lambda b, t: (0, 0)),           # W_hh^T
                pl.BlockSpec((H, O_pad), lambda b, t: (0, 0)),           # W_dense^T (padded)
                pl.BlockSpec((1, O_pad), lambda b, t: (0, 0)),           # b_dense (padded)
            ],
            out_specs=pl.BlockSpec((Bb, O_pad), lambda b, t: (b, 0)),
            scratch_shapes=[
                pltpu.VMEM((Bb, H), jnp.float32),   # h carry
                pltpu.VMEM((Bb, H), jnp.float32),   # c carry
            ],
        ),
        compiler_params=pltpu.CompilerParams(
            dimension_semantics=("parallel", "arbitrary")),
    )(x_len[:, None].astype(jnp.int32), gx,
      w_hh_t.astype(jnp.bfloat16), wd, bd)
    return out[:, :O]


def _reference(text_indices, embedding_matrix, w_ih_t, w_hh_t, b_gates,
               w_dense_t, b_dense):
    """Pure-JAX reference with the same bf16-matmul / f32-accumulate policy."""
    B, T = text_indices.shape
    H = w_hh_t.shape[0]
    x = jnp.take(embedding_matrix, text_indices, axis=0)
    x_len = jnp.sum((text_indices != 0).astype(jnp.int32), axis=-1)
    x_tm = jnp.transpose(x, (1, 0, 2)).astype(jnp.bfloat16)
    wih = w_ih_t.astype(jnp.bfloat16)
    whh = w_hh_t.astype(jnp.bfloat16)
    gx = (jnp.einsum("tbe,eg->tbg", x_tm, wih,
                     preferred_element_type=jnp.float32) + b_gates)    # (T,B,4H)
    mask = (jnp.arange(T)[:, None] < x_len[None, :])[:, :, None]       # (T,B,1)

    def step(carry, inp):
        h, c = carry
        g_x, m = inp
        g = g_x + jnp.dot(h.astype(jnp.bfloat16), whh,
                          preferred_element_type=jnp.float32)
        i = jax.nn.sigmoid(g[:, 0 * H:1 * H])
        f = jax.nn.sigmoid(g[:, 1 * H:2 * H])
        gg = jnp.tanh(g[:, 2 * H:3 * H])
        o = jax.nn.sigmoid(g[:, 3 * H:4 * H])
        c_new = f * c + i * gg
        h_new = o * jnp.tanh(c_new)
        return (jnp.where(m, h_new, h), jnp.where(m, c_new, c)), None

    (h, _), _ = jax.lax.scan(step,
                             (jnp.zeros((B, H), jnp.float32),
                              jnp.zeros((B, H), jnp.float32)),
                             (gx, mask))
    return (jnp.dot(h.astype(jnp.bfloat16), w_dense_t.astype(jnp.bfloat16),
                    preferred_element_type=jnp.float32) + b_dense[0])


if __name__ == "__main__":
    # config: embed_dim=32, hidden_dim=32, output_dim=4, num_lstm_layer=1
    VOCAB, E, H, O = 50, 32, 32, 4
    B, T = 8, 16

    key = jax.random.PRNGKey(0)
    k_emb, k_wih, k_whh, k_bih, k_bhh, k_wd, k_bd, k_idx, k_len = \
        jax.random.split(key, 9)

    bound = 1.0 / jnp.sqrt(H)
    embedding_matrix = jax.random.normal(k_emb, (VOCAB, E), jnp.float32)
    embedding_matrix = embedding_matrix.at[0].set(0.0)  # pad row

    # PyTorch nn.LSTM params: weight_ih_l0 (4H,E), weight_hh_l0 (4H,H), biases (4H,)
    w_ih = jax.random.uniform(k_wih, (4 * H, E), jnp.float32, -bound, bound)
    w_hh = jax.random.uniform(k_whh, (4 * H, H), jnp.float32, -bound, bound)
    b_ih = jax.random.uniform(k_bih, (4 * H,), jnp.float32, -bound, bound)
    b_hh = jax.random.uniform(k_bhh, (4 * H,), jnp.float32, -bound, bound)
    # dense: Linear(hidden_dim, output_dim)
    w_d = jax.random.uniform(k_wd, (O, H), jnp.float32, -bound, bound)
    b_d = jax.random.uniform(k_bd, (O,), jnp.float32, -bound, bound)

    # pre-transpose / combine for the kernel (row-major GEMM layouts)
    w_ih_t = w_ih.T                              # (E, 4H)
    w_hh_t = w_hh.T                              # (H, 4H)
    b_gates = (b_ih + b_hh)[None, :]             # (1, 4H)
    w_dense_t = w_d.T                            # (H, O)
    b_dense = b_d[None, :]                       # (1, O)

    # synthetic token ids with suffix padding (pack_padded_sequence convention)
    lengths = jax.random.randint(k_len, (B,), 3, T + 1)
    tokens = jax.random.randint(k_idx, (B, T), 1, VOCAB)
    pad_mask = jnp.arange(T)[None, :] < lengths[:, None]
    text_indices = jnp.where(pad_mask, tokens, 0).astype(jnp.int32)
    rna_type = jnp.zeros((B,), jnp.int32)  # second model input; unused by forward

    out = lstm_forward(text_indices, embedding_matrix, w_ih_t, w_hh_t,
                       b_gates, w_dense_t, b_dense)
    out = jax.block_until_ready(out)

    ref = _reference(text_indices, embedding_matrix, w_ih_t, w_hh_t,
                     b_gates, w_dense_t, b_dense)
    assert out.shape == (B, O)
    assert jnp.allclose(out, ref, atol=1e-2, rtol=1e-2)
    print("KERNEL_OK")
</pallas_src>

<mosaic_0001>
module attributes {stable_mosaic.version = 11 : i64} {
  func.func @_lstm_recurrence_kernel(%arg0: i32, %arg1: i32, %arg2: memref<8x1xi32, #tpu.memory_space<vmem>>, %arg3: memref<16x8x128xf32, #tpu.memory_space<vmem>>, %arg4: memref<32x128xbf16, #tpu.memory_space<vmem>>, %arg5: memref<32x128xbf16, #tpu.memory_space<vmem>>, %arg6: memref<1x128xf32, #tpu.memory_space<vmem>>, %arg7: memref<8x128xf32, #tpu.memory_space<vmem>>, %arg8: memref<8x32xf32, #tpu.memory_space<vmem>>, %arg9: memref<8x32xf32, #tpu.memory_space<vmem>>) attributes {dimension_semantics = [#tpu.dimension_semantics<parallel>, #tpu.dimension_semantics<arbitrary>], iteration_bounds = array<i64: 1, 1>, scalar_prefetch = 0 : i64, scratch_operands = 2 : i64, tpu.core_type = #tpu.core_type<tc>, window_params = [{transform_indices = @transform_0, window_bounds = array<i64: 8, 1>}, {transform_indices = @transform_1, window_bounds = array<i64: 16, 8, 128>}, {pipeline_mode = #tpu.pipeline_mode<synchronous>, transform_indices = @transform_2, window_bounds = array<i64: 32, 128>}, {pipeline_mode = #tpu.pipeline_mode<synchronous>, transform_indices = @transform_3, window_bounds = array<i64: 32, 128>}, {pipeline_mode = #tpu.pipeline_mode<synchronous>, transform_indices = @transform_4, window_bounds = array<i64: 1, 128>}, {transform_indices = @transform_5, window_bounds = array<i64: 8, 128>}]} {
    %c0_i32 = arith.constant 0 : i32
    %0 = arith.cmpi eq, %arg1, %c0_i32 : i32
    %1 = arith.extui %0 : i1 to i32
    %c0_i32_0 = arith.constant 0 : i32
    %2 = arith.cmpi ne, %1, %c0_i32_0 : i32
    scf.if %2 {
      %cst_79 = arith.constant 0.000000e+00 : f32
      %493 = vector.broadcast %cst_79 : f32 to vector<8x32xf32>
      %c0_80 = arith.constant 0 : index
      %c0_81 = arith.constant 0 : index
      %494 = vector.load %arg8[%c0_80, %c0_81] : memref<8x32xf32, #tpu.memory_space<vmem>>, vector<8x32xf32>
      tpu.vector_store %arg8[%c0_80, %c0_81], %493 {strides = array<i32>} : memref<8x32xf32, #tpu.memory_space<vmem>>, vector<8x32xf32>,
      %cst_82 = arith.constant 0.000000e+00 : f32
      %495 = vector.broadcast %cst_82 : f32 to vector<8x32xf32>
      %c0_83 = arith.constant 0 : index
      %c0_84 = arith.constant 0 : index
      %496 = vector.load %arg9[%c0_83, %c0_84] : memref<8x32xf32, #tpu.memory_space<vmem>>, vector<8x32xf32>
      tpu.vector_store %arg9[%c0_83, %c0_84], %495 {strides = array<i32>} : memref<8x32xf32, #tpu.memory_space<vmem>>, vector<8x32xf32>,
    } else {
    }
    %c0 = arith.constant 0 : index
    %c0_1 = arith.constant 0 : index
    %3 = vector.load %arg4[%c0, %c0_1] : memref<32x128xbf16, #tpu.memory_space<vmem>>, vector<32x128xbf16>
    %c0_2 = arith.constant 0 : index
    %c0_3 = arith.constant 0 : index
    %4 = vector.load %arg2[%c0_2, %c0_3] : memref<8x1xi32, #tpu.memory_space<vmem>>, vector<8x1xi32>
    %c16_i32 = arith.constant 16 : i32
    %5 = arith.muli %arg1, %c16_i32 : i32
    %c0_4 = arith.constant 0 : index
    %c0_5 = arith.constant 0 : index
    %6 = vector.load %arg8[%c0_4, %c0_5] : memref<8x32xf32, #tpu.memory_space<vmem>>, vector<8x32xf32>
    %c0_6 = arith.constant 0 : index
    %c0_7 = arith.constant 0 : index
    %7 = vector.load %arg9[%c0_6, %c0_7] : memref<8x32xf32, #tpu.memory_space<vmem>>, vector<8x32xf32>
    %c0_i32_8 = arith.constant 0 : i32
    %8 = arith.index_cast %c0_i32_8 : i32 to index
    %c0_9 = arith.constant 0 : index
    %c0_10 = arith.constant 0 : index
    %9 = vector.load %arg3[%8, %c0_9, %c0_10] : memref<16x8x128xf32, #tpu.memory_space<vmem>>, vector<1x8x128xf32>
    %10 = vector.shape_cast %9 : vector<1x8x128xf32> to vector<8x128xf32>
    %11 = arith.truncf %6 : vector<8x32xf32> to vector<8x32xbf16>
    %cst = arith.constant dense<0.000000e+00> : vector<8x128xf32>
    %12 = tpu.matmul %11, %3, %cst {dimension_numbers = #tpu.dot_dimension_numbers<[1], [0], [0], [1], [0, 0, 1, 1], [], []>} : vector<8x32xbf16>, vector<32x128xbf16>, vector<8x128xf32> -> vector<8x128xf32>
    %13 = arith.addf %10, %12 : vector<8x128xf32>
    %14 = arith.negf %13 : vector<8x128xf32>
    %15 = math.exp %14 : vector<8x128xf32>
    %cst_11 = arith.constant 1.000000e+00 : f32
    %16 = vector.broadcast %cst_11 : f32 to vector<8x128xf32>
    %17 = arith.addf %16, %15 : vector<8x128xf32>
    %18 = arith.divf %16, %17 : vector<8x128xf32>
    %19 = math.tanh %13 : vector<8x128xf32>
    %20 = vector.extract_strided_slice %18 {offsets = [0, 0], sizes = [8, 32], strides = [1, 1]} : vector<8x128xf32> to vector<8x32xf32>
    %21 = vector.extract_strided_slice %18 {offsets = [0, 32], sizes = [8, 32], strides = [1, 1]} : vector<8x128xf32> to vector<8x32xf32>
    %22 = vector.extract_strided_slice %19 {offsets = [0, 64], sizes = [8, 32], strides = [1, 1]} : vector<8x128xf32> to vector<8x32xf32>
    %23 = vector.extract_strided_slice %18 {offsets = [0, 96], sizes = [8, 32], strides = [1, 1]} : vector<8x128xf32> to vector<8x32xf32>
    %24 = arith.mulf %21, %7 : vector<8x32xf32>
    %25 = arith.mulf %20, %22 : vector<8x32xf32>
    %26 = arith.addf %24, %25 : vector<8x32xf32>
    %27 = math.tanh %26 : vector<8x32xf32>
    %28 = arith.mulf %23, %27 : vector<8x32xf32>
    %29 = arith.addi %5, %c0_i32_8 : i32
    %30 = vector.broadcast %29 : i32 to vector<8x1xi32>
    %31 = arith.cmpi slt, %30, %4 : vector<8x1xi32>
    %32 = vector.shape_cast %31 : vector<8x1xi1> to vector<8x1xi1>
    %33 = vector.broadcast %32 : vector<8x1xi1> to vector<8x32xi1>
    %34 = arith.select %33, %28, %6 : vector<8x32xi1>, vector<8x32xf32>
    %35 = vector.shape_cast %31 : vector<8x1xi1> to vector<8x1xi1>
    %36 = vector.broadcast %35 : vector<8x1xi1> to vector<8x32xi1>
    %37 = arith.select %36, %26, %7 : vector<8x32xi1>, vector<8x32xf32>
    %c1_i32 = arith.constant 1 : i32
    %38 = arith.index_cast %c1_i32 : i32 to index
    %c0_12 = arith.constant 0 : index
    %c0_13 = arith.constant 0 : index
    %39 = vector.load %arg3[%38, %c0_12, %c0_13] : memref<16x8x128xf32, #tpu.memory_space<vmem>>, vector<1x8x128xf32>
    %40 = vector.shape_cast %39 : vector<1x8x128xf32> to vector<8x128xf32>
    %41 = arith.truncf %34 : vector<8x32xf32> to vector<8x32xbf16>
    %cst_14 = arith.constant dense<0.000000e+00> : vector<8x128xf32>
    %42 = tpu.matmul %41, %3, %cst_14 {dimension_numbers = #tpu.dot_dimension_numbers<[1], [0], [0], [1], [0, 0, 1, 1], [], []>} : vector<8x32xbf16>, vector<32x128xbf16>, vector<8x128xf32> -> vector<8x128xf32>
    %43 = arith.addf %40, %42 : vector<8x128xf32>
    %44 = arith.negf %43 : vector<8x128xf32>
    %45 = math.exp %44 : vector<8x128xf32>
    %cst_15 = arith.constant 1.000000e+00 : f32
    %46 = vector.broadcast %cst_15 : f32 to vector<8x128xf32>
    %47 = arith.addf %46, %45 : vector<8x128xf32>
    %48 = arith.divf %46, %47 : vector<8x128xf32>
    %49 = math.tanh %43 : vector<8x128xf32>
    %50 = vector.extract_strided_slice %48 {offsets = [0, 0], sizes = [8, 32], strides = [1, 1]} : vector<8x128xf32> to vector<8x32xf32>
    %51 = vector.extract_strided_slice %48 {offsets = [0, 32], sizes = [8, 32], strides = [1, 1]} : vector<8x128xf32> to vector<8x32xf32>
    %52 = vector.extract_strided_slice %49 {offsets = [0, 64], sizes = [8, 32], strides = [1, 1]} : vector<8x128xf32> to vector<8x32xf32>
    %53 = vector.extract_strided_slice %48 {offsets = [0, 96], sizes = [8, 32], strides = [1, 1]} : vector<8x128xf32> to vector<8x32xf32>
    %54 = arith.mulf %51, %37 : vector<8x32xf32>
    %55 = arith.mulf %50, %52 : vector<8x32xf32>
    %56 = arith.addf %54, %55 : vector<8x32xf32>
    %57 = math.tanh %56 : vector<8x32xf32>
    %58 = arith.mulf %53, %57 : vector<8x32xf32>
    %59 = arith.addi %5, %c1_i32 : i32
    %60 = vector.broadcast %59 : i32 to vector<8x1xi32>
    %61 = arith.cmpi slt, %60, %4 : vector<8x1xi32>
    %62 = vector.shape_cast %61 : vector<8x1xi1> to vector<8x1xi1>
    %63 = vector.broadcast %62 : vector<8x1xi1> to vector<8x32xi1>
    %64 = arith.select %63, %58, %34 : vector<8x32xi1>, vector<8x32xf32>
    %65 = vector.shape_cast %61 : vector<8x1xi1> to vector<8x1xi1>
    %66 = vector.broadcast %65 : vector<8x1xi1> to vector<8x32xi1>
    %67 = arith.select %66, %56, %37 : vector<8x32xi1>, vector<8x32xf32>
    %c2_i32 = arith.constant 2 : i32
    %68 = arith.index_cast %c2_i32 : i32 to index
    %c0_16 = arith.constant 0 : index
    %c0_17 = arith.constant 0 : index
    %69 = vector.load %arg3[%68, %c0_16, %c0_17] : memref<16x8x128xf32, #tpu.memory_space<vmem>>, vector<1x8x128xf32>
    %70 = vector.shape_cast %69 : vector<1x8x128xf32> to vector<8x128xf32>
    %71 = arith.truncf %64 : vector<8x32xf32> to vector<8x32xbf16>
    %cst_18 = arith.constant dense<0.000000e+00> : vector<8x128xf32>
    %72 = tpu.matmul %71, %3, %cst_18 {dimension_numbers = #tpu.dot_dimension_numbers<[1], [0], [0], [1], [0, 0, 1, 1], [], []>} : vector<8x32xbf16>, vector<32x128xbf16>, vector<8x128xf32> -> vector<8x128xf32>
    %73 = arith.addf %70, %72 : vector<8x128xf32>
    %74 = arith.negf %73 : vector<8x128xf32>
    %75 = math.exp %74 : vector<8x128xf32>
    %cst_19 = arith.constant 1.000000e+00 : f32
    %76 = vector.broadcast %cst_19 : f32 to vector<8x128xf32>
    %77 = arith.addf %76, %75 : vector<8x128xf32>
    %78 = arith.divf %76, %77 : vector<8x128xf32>
    %79 = math.tanh %73 : vector<8x128xf32>
    %80 = vector.extract_strided_slice %78 {offsets = [0, 0], sizes = [8, 32], strides = [1, 1]} : vector<8x128xf32> to vector<8x32xf32>
    %81 = vector.extract_strided_slice %78 {offsets = [0, 32], sizes = [8, 32], strides = [1, 1]} : vector<8x128xf32> to vector<8x32xf32>
    %82 = vector.extract_strided_slice %79 {offsets = [0, 64], sizes = [8, 32], strides = [1, 1]} : vector<8x128xf32> to vector<8x32xf32>
    %83 = vector.extract_strided_slice %78 {offsets = [0, 96], sizes = [8, 32], strides = [1, 1]} : vector<8x128xf32> to vector<8x32xf32>
    %84 = arith.mulf %81, %67 : vector<8x32xf32>
    %85 = arith.mulf %80, %82 : vector<8x32xf32>
    %86 = arith.addf %84, %85 : vector<8x32xf32>
    %87 = math.tanh %86 : vector<8x32xf32>
    %88 = arith.mulf %83, %87 : vector<8x32xf32>
    %89 = arith.addi %5, %c2_i32 : i32
    %90 = vector.broadcast %89 : i32 to vector<8x1xi32>
    %91 = arith.cmpi slt, %90, %4 : vector<8x1xi32>
    %92 = vector.shape_cast %91 : vector<8x1xi1> to vector<8x1xi1>
    %93 = vector.broadcast %92 : vector<8x1xi1> to vector<8x32xi1>
    %94 = arith.select %93, %88, %64 : vector<8x32xi1>, vector<8x32xf32>
    %95 = vector.shape_cast %91 : vector<8x1xi1> to vector<8x1xi1>
    %96 = vector.broadcast %95 : vector<8x1xi1> to vector<8x32xi1>
    %97 = arith.select %96, %86, %67 : vector<8x32xi1>, vector<8x32xf32>
    %c3_i32 = arith.constant 3 : i32
    %98 = arith.index_cast %c3_i32 : i32 to index
    %c0_20 = arith.constant 0 : index
    %c0_21 = arith.constant 0 : index
    %99 = vector.load %arg3[%98, %c0_20, %c0_21] : memref<16x8x128xf32, #tpu.memory_space<vmem>>, vector<1x8x128xf32>
    %100 = vector.shape_cast %99 : vector<1x8x128xf32> to vector<8x128xf32>
    %101 = arith.truncf %94 : vector<8x32xf32> to vector<8x32xbf16>
    %cst_22 = arith.constant dense<0.000000e+00> : vector<8x128xf32>
    %102 = tpu.matmul %101, %3, %cst_22 {dimension_numbers = #tpu.dot_dimension_numbers<[1], [0], [0], [1], [0, 0, 1, 1], [], []>} : vector<8x32xbf16>, vector<32x128xbf16>, vector<8x128xf32> -> vector<8x128xf32>
    %103 = arith.addf %100, %102 : vector<8x128xf32>
    %104 = arith.negf %103 : vector<8x128xf32>
    %105 = math.exp %104 : vector<8x128xf32>
    %cst_23 = arith.constant 1.000000e+00 : f32
    %106 = vector.broadcast %cst_23 : f32 to vector<8x128xf32>
    %107 = arith.addf %106, %105 : vector<8x128xf32>
    %108 = arith.divf %106, %107 : vector<8x128xf32>
    %109 = math.tanh %103 : vector<8x128xf32>
    %110 = vector.extract_strided_slice %108 {offsets = [0, 0], sizes = [8, 32], strides = [1, 1]} : vector<8x128xf32> to vector<8x32xf32>
    %111 = vector.extract_strided_slice %108 {offsets = [0, 32], sizes = [8, 32], strides = [1, 1]} : vector<8x128xf32> to vector<8x32xf32>
    %112 = vector.extract_strided_slice %109 {offsets = [0, 64], sizes = [8, 32], strides = [1, 1]} : vector<8x128xf32> to vector<8x32xf32>
    %113 = vector.extract_strided_slice %108 {offsets = [0, 96], sizes = [8, 32], strides = [1, 1]} : vector<8x128xf32> to vector<8x32xf32>
    %114 = arith.mulf %111, %97 : vector<8x32xf32>
    %115 = arith.mulf %110, %112 : vector<8x32xf32>
    %116 = arith.addf %114, %115 : vector<8x32xf32>
    %117 = math.tanh %116 : vector<8x32xf32>
    %118 = arith.mulf %113, %117 : vector<8x32xf32>
    %119 = arith.addi %5, %c3_i32 : i32
    %120 = vector.broadcast %119 : i32 to vector<8x1xi32>
    %121 = arith.cmpi slt, %120, %4 : vector<8x1xi32>
    %122 = vector.shape_cast %121 : vector<8x1xi1> to vector<8x1xi1>
    %123 = vector.broadcast %122 : vector<8x1xi1> to vector<8x32xi1>
    %124 = arith.select %123, %118, %94 : vector<8x32xi1>, vector<8x32xf32>
    %125 = vector.shape_cast %121 : vector<8x1xi1> to vector<8x1xi1>
    %126 = vector.broadcast %125 : vector<8x1xi1> to vector<8x32xi1>
    %127 = arith.select %126, %116, %97 : vector<8x32xi1>, vector<8x32xf32>
    %c4_i32 = arith.constant 4 : i32
    %128 = arith.index_cast %c4_i32 : i32 to index
    %c0_24 = arith.constant 0 : index
    %c0_25 = arith.constant 0 : index
    %129 = vector.load %arg3[%128, %c0_24, %c0_25] : memref<16x8x128xf32, #tpu.memory_space<vmem>>, vector<1x8x128xf32>
    %130 = vector.shape_cast %129 : vector<1x8x128xf32> to vector<8x128xf32>
    %131 = arith.truncf %124 : vector<8x32xf32> to vector<8x32xbf16>
    %cst_26 = arith.constant dense<0.000000e+00> : vector<8x128xf32>
    %132 = tpu.matmul %131, %3, %cst_26 {dimension_numbers = #tpu.dot_dimension_numbers<[1], [0], [0], [1], [0, 0, 1, 1], [], []>} : vector<8x32xbf16>, vector<32x128xbf16>, vector<8x128xf32> -> vector<8x128xf32>
    %133 = arith.addf %130, %132 : vector<8x128xf32>
    %134 = arith.negf %133 : vector<8x128xf32>
    %135 = math.exp %134 : vector<8x128xf32>
    %cst_27 = arith.constant 1.000000e+00 : f32
    %136 = vector.broadcast %cst_27 : f32 to vector<8x128xf32>
    %137 = arith.addf %136, %135 : vector<8x128xf32>
    %138 = arith.divf %136, %137 : vector<8x128xf32>
    %139 = math.tanh %133 : vector<8x128xf32>
    %140 = vector.extract_strided_slice %138 {offsets = [0, 0], sizes = [8, 32], strides = [1, 1]} : vector<8x128xf32> to vector<8x32xf32>
    %141 = vector.extract_strided_slice %138 {offsets = [0, 32], sizes = [8, 32], strides = [1, 1]} : vector<8x128xf32> to vector<8x32xf32>
    %142 = vector.extract_strided_slice %139 {offsets = [0, 64], sizes = [8, 32], strides = [1, 1]} : vector<8x128xf32> to vector<8x32xf32>
    %143 = vector.extract_strided_slice %138 {offsets = [0, 96], sizes = [8, 32], strides = [1, 1]} : vector<8x128xf32> to vector<8x32xf32>
    %144 = arith.mulf %141, %127 : vector<8x32xf32>
    %145 = arith.mulf %140, %142 : vector<8x32xf32>
    %146 = arith.addf %144, %145 : vector<8x32xf32>
    %147 = math.tanh %146 : vector<8x32xf32>
    %148 = arith.mulf %143, %147 : vector<8x32xf32>
    %149 = arith.addi %5, %c4_i32 : i32
    %150 = vector.broadcast %149 : i32 to vector<8x1xi32>
    %151 = arith.cmpi slt, %150, %4 : vector<8x1xi32>
    %152 = vector.shape_cast %151 : vector<8x1xi1> to vector<8x1xi1>
    %153 = vector.broadcast %152 : vector<8x1xi1> to vector<8x32xi1>
    %154 = arith.select %153, %148, %124 : vector<8x32xi1>, vector<8x32xf32>
    %155 = vector.shape_cast %151 : vector<8x1xi1> to vector<8x1xi1>
    %156 = vector.broadcast %155 : vector<8x1xi1> to vector<8x32xi1>
    %157 = arith.select %156, %146, %127 : vector<8x32xi1>, vector<8x32xf32>
    %c5_i32 = arith.constant 5 : i32
    %158 = arith.index_cast %c5_i32 : i32 to index
    %c0_28 = arith.constant 0 : index
    %c0_29 = arith.constant 0 : index
    %159 = vector.load %arg3[%158, %c0_28, %c0_29] : memref<16x8x128xf32, #tpu.memory_space<vmem>>, vector<1x8x128xf32>
    %160 = vector.shape_cast %159 : vector<1x8x128xf32> to vector<8x128xf32>
    %161 = arith.truncf %154 : vector<8x32xf32> to vector<8x32xbf16>
    %cst_30 = arith.constant dense<0.000000e+00> : vector<8x128xf32>
    %162 = tpu.matmul %161, %3, %cst_30 {dimension_numbers = #tpu.dot_dimension_numbers<[1], [0], [0], [1], [0, 0, 1, 1], [], []>} : vector<8x32xbf16>, vector<32x128xbf16>, vector<8x128xf32> -> vector<8x128xf32>
    %163 = arith.addf %160, %162 : vector<8x128xf32>
    %164 = arith.negf %163 : vector<8x128xf32>
    %165 = math.exp %164 : vector<8x128xf32>
    %cst_31 = arith.constant 1.000000e+00 : f32
    %166 = vector.broadcast %cst_31 : f32 to vector<8x128xf32>
    %167 = arith.addf %166, %165 : vector<8x128xf32>
    %168 = arith.divf %166, %167 : vector<8x128xf32>
    %169 = math.tanh %163 : vector<8x128xf32>
    %170 = vector.extract_strided_slice %168 {offsets = [0, 0], sizes = [8, 32], strides = [1, 1]} : vector<8x128xf32> to vector<8x32xf32>
    %171 = vector.extract_strided_slice %168 {offsets = [0, 32], sizes = [8, 32], strides = [1, 1]} : vector<8x128xf32> to vector<8x32xf32>
    %172 = vector.extract_strided_slice %169 {offsets = [0, 64], sizes = [8, 32], strides = [1, 1]} : vector<8x128xf32> to vector<8x32xf32>
    %173 = vector.extract_strided_slice %168 {offsets = [0, 96], sizes = [8, 32], strides = [1, 1]} : vector<8x128xf32> to vector<8x32xf32>
    %174 = arith.mulf %171, %157 : vector<8x32xf32>
    %175 = arith.mulf %170, %172 : vector<8x32xf32>
    %176 = arith.addf %174, %175 : vector<8x32xf32>
    %177 = math.tanh %176 : vector<8x32xf32>
    %178 = arith.mulf %173, %177 : vector<8x32xf32>
    %179 = arith.addi %5, %c5_i32 : i32
    %180 = vector.broadcast %179 : i32 to vector<8x1xi32>
    %181 = arith.cmpi slt, %180, %4 : vector<8x1xi32>
    %182 = vector.shape_cast %181 : vector<8x1xi1> to vector<8x1xi1>
    %183 = vector.broadcast %182 : vector<8x1xi1> to vector<8x32xi1>
    %184 = arith.select %183, %178, %154 : vector<8x32xi1>, vector<8x32xf32>
    %185 = vector.shape_cast %181 : vector<8x1xi1> to vector<8x1xi1>
    %186 = vector.broadcast %185 : vector<8x1xi1> to vector<8x32xi1>
    %187 = arith.select %186, %176, %157 : vector<8x32xi1>, vector<8x32xf32>
    %c6_i32 = arith.constant 6 : i32
    %188 = arith.index_cast %c6_i32 : i32 to index
    %c0_32 = arith.constant 0 : index
    %c0_33 = arith.constant 0 : index
    %189 = vector.load %arg3[%188, %c0_32, %c0_33] : memref<16x8x128xf32, #tpu.memory_space<vmem>>, vector<1x8x128xf32>
    %190 = vector.shape_cast %189 : vector<1x8x128xf32> to vector<8x128xf32>
    %191 = arith.truncf %184 : vector<8x32xf32> to vector<8x32xbf16>
    %cst_34 = arith.constant dense<0.000000e+00> : vector<8x128xf32>
    %192 = tpu.matmul %191, %3, %cst_34 {dimension_numbers = #tpu.dot_dimension_numbers<[1], [0], [0], [1], [0, 0, 1, 1], [], []>} : vector<8x32xbf16>, vector<32x128xbf16>, vector<8x128xf32> -> vector<8x128xf32>
    %193 = arith.addf %190, %192 : vector<8x128xf32>
    %194 = arith.negf %193 : vector<8x128xf32>
    %195 = math.exp %194 : vector<8x128xf32>
    %cst_35 = arith.constant 1.000000e+00 : f32
    %196 = vector.broadcast %cst_35 : f32 to vector<8x128xf32>
    %197 = arith.addf %196, %195 : vector<8x128xf32>
    %198 = arith.divf %196, %197 : vector<8x128xf32>
    %199 = math.tanh %193 : vector<8x128xf32>
    %200 = vector.extract_strided_slice %198 {offsets = [0, 0], sizes = [8, 32], strides = [1, 1]} : vector<8x128xf32> to vector<8x32xf32>
    %201 = vector.extract_strided_slice %198 {offsets = [0, 32], sizes = [8, 32], strides = [1, 1]} : vector<8x128xf32> to vector<8x32xf32>
    %202 = vector.extract_strided_slice %199 {offsets = [0, 64], sizes = [8, 32], strides = [1, 1]} : vector<8x128xf32> to vector<8x32xf32>
    %203 = vector.extract_strided_slice %198 {offsets = [0, 96], sizes = [8, 32], strides = [1, 1]} : vector<8x128xf32> to vector<8x32xf32>
    %204 = arith.mulf %201, %187 : vector<8x32xf32>
    %205 = arith.mulf %200, %202 : vector<8x32xf32>
    %206 = arith.addf %204, %205 : vector<8x32xf32>
    %207 = math.tanh %206 : vector<8x32xf32>
    %208 = arith.mulf %203, %207 : vector<8x32xf32>
    %209 = arith.addi %5, %c6_i32 : i32
    %210 = vector.broadcast %209 : i32 to vector<8x1xi32>
    %211 = arith.cmpi slt, %210, %4 : vector<8x1xi32>
    %212 = vector.shape_cast %211 : vector<8x1xi1> to vector<8x1xi1>
    %213 = vector.broadcast %212 : vector<8x1xi1> to vector<8x32xi1>
    %214 = arith.select %213, %208, %184 : vector<8x32xi1>, vector<8x32xf32>
    %215 = vector.shape_cast %211 : vector<8x1xi1> to vector<8x1xi1>
    %216 = vector.broadcast %215 : vector<8x1xi1> to vector<8x32xi1>
    %217 = arith.select %216, %206, %187 : vector<8x32xi1>, vector<8x32xf32>
    %c7_i32 = arith.constant 7 : i32
    %218 = arith.index_cast %c7_i32 : i32 to index
    %c0_36 = arith.constant 0 : index
    %c0_37 = arith.constant 0 : index
    %219 = vector.load %arg3[%218, %c0_36, %c0_37] : memref<16x8x128xf32, #tpu.memory_space<vmem>>, vector<1x8x128xf32>
    %220 = vector.shape_cast %219 : vector<1x8x128xf32> to vector<8x128xf32>
    %221 = arith.truncf %214 : vector<8x32xf32> to vector<8x32xbf16>
    %cst_38 = arith.constant dense<0.000000e+00> : vector<8x128xf32>
    %222 = tpu.matmul %221, %3, %cst_38 {dimension_numbers = #tpu.dot_dimension_numbers<[1], [0], [0], [1], [0, 0, 1, 1], [], []>} : vector<8x32xbf16>, vector<32x128xbf16>, vector<8x128xf32> -> vector<8x128xf32>
    %223 = arith.addf %220, %222 : vector<8x128xf32>
    %224 = arith.negf %223 : vector<8x128xf32>
    %225 = math.exp %224 : vector<8x128xf32>
    %cst_39 = arith.constant 1.000000e+00 : f32
    %226 = vector.broadcast %cst_39 : f32 to vector<8x128xf32>
    %227 = arith.addf %226, %225 : vector<8x128xf32>
    %228 = arith.divf %226, %227 : vector<8x128xf32>
    %229 = math.tanh %223 : vector<8x128xf32>
    %230 = vector.extract_strided_slice %228 {offsets = [0, 0], sizes = [8, 32], strides = [1, 1]} : vector<8x128xf32> to vector<8x32xf32>
    %231 = vector.extract_strided_slice %228 {offsets = [0, 32], sizes = [8, 32], strides = [1, 1]} : vector<8x128xf32> to vector<8x32xf32>
    %232 = vector.extract_strided_slice %229 {offsets = [0, 64], sizes = [8, 32], strides = [1, 1]} : vector<8x128xf32> to vector<8x32xf32>
    %233 = vector.extract_strided_slice %228 {offsets = [0, 96], sizes = [8, 32], strides = [1, 1]} : vector<8x128xf32> to vector<8x32xf32>
    %234 = arith.mulf %231, %217 : vector<8x32xf32>
    %235 = arith.mulf %230, %232 : vector<8x32xf32>
    %236 = arith.addf %234, %235 : vector<8x32xf32>
    %237 = math.tanh %236 : vector<8x32xf32>
    %238 = arith.mulf %233, %237 : vector<8x32xf32>
    %239 = arith.addi %5, %c7_i32 : i32
    %240 = vector.broadcast %239 : i32 to vector<8x1xi32>
    %241 = arith.cmpi slt, %240, %4 : vector<8x1xi32>
    %242 = vector.shape_cast %241 : vector<8x1xi1> to vector<8x1xi1>
    %243 = vector.broadcast %242 : vector<8x1xi1> to vector<8x32xi1>
    %244 = arith.select %243, %238, %214 : vector<8x32xi1>, vector<8x32xf32>
    %245 = vector.shape_cast %241 : vector<8x1xi1> to vector<8x1xi1>
    %246 = vector.broadcast %245 : vector<8x1xi1> to vector<8x32xi1>
    %247 = arith.select %246, %236, %217 : vector<8x32xi1>, vector<8x32xf32>
    %c8_i32 = arith.constant 8 : i32
    %248 = arith.index_cast %c8_i32 : i32 to index
    %c0_40 = arith.constant 0 : index
    %c0_41 = arith.constant 0 : index
    %249 = vector.load %arg3[%248, %c0_40, %c0_41] : memref<16x8x128xf32, #tpu.memory_space<vmem>>, vector<1x8x128xf32>
    %250 = vector.shape_cast %249 : vector<1x8x128xf32> to vector<8x128xf32>
    %251 = arith.truncf %244 : vector<8x32xf32> to vector<8x32xbf16>
    %cst_42 = arith.constant dense<0.000000e+00> : vector<8x128xf32>
    %252 = tpu.matmul %251, %3, %cst_42 {dimension_numbers = #tpu.dot_dimension_numbers<[1], [0], [0], [1], [0, 0, 1, 1], [], []>} : vector<8x32xbf16>, vector<32x128xbf16>, vector<8x128xf32> -> vector<8x128xf32>
    %253 = arith.addf %250, %252 : vector<8x128xf32>
    %254 = arith.negf %253 : vector<8x128xf32>
    %255 = math.exp %254 : vector<8x128xf32>
    %cst_43 = arith.constant 1.000000e+00 : f32
    %256 = vector.broadcast %cst_43 : f32 to vector<8x128xf32>
    %257 = arith.addf %256, %255 : vector<8x128xf32>
    %258 = arith.divf %256, %257 : vector<8x128xf32>
    %259 = math.tanh %253 : vector<8x128xf32>
    %260 = vector.extract_strided_slice %258 {offsets = [0, 0], sizes = [8, 32], strides = [1, 1]} : vector<8x128xf32> to vector<8x32xf32>
    %261 = vector.extract_strided_slice %258 {offsets = [0, 32], sizes = [8, 32], strides = [1, 1]} : vector<8x128xf32> to vector<8x32xf32>
    %262 = vector.extract_strided_slice %259 {offsets = [0, 64], sizes = [8, 32], strides = [1, 1]} : vector<8x128xf32> to vector<8x32xf32>
    %263 = vector.extract_strided_slice %258 {offsets = [0, 96], sizes = [8, 32], strides = [1, 1]} : vector<8x128xf32> to vector<8x32xf32>
    %264 = arith.mulf %261, %247 : vector<8x32xf32>
    %265 = arith.mulf %260, %262 : vector<8x32xf32>
    %266 = arith.addf %264, %265 : vector<8x32xf32>
    %267 = math.tanh %266 : vector<8x32xf32>
    %268 = arith.mulf %263, %267 : vector<8x32xf32>
    %269 = arith.addi %5, %c8_i32 : i32
    %270 = vector.broadcast %269 : i32 to vector<8x1xi32>
    %271 = arith.cmpi slt, %270, %4 : vector<8x1xi32>
    %272 = vector.shape_cast %271 : vector<8x1xi1> to vector<8x1xi1>
    %273 = vector.broadcast %272 : vector<8x1xi1> to vector<8x32xi1>
    %274 = arith.select %273, %268, %244 : vector<8x32xi1>, vector<8x32xf32>
    %275 = vector.shape_cast %271 : vector<8x1xi1> to vector<8x1xi1>
    %276 = vector.broadcast %275 : vector<8x1xi1> to vector<8x32xi1>
    %277 = arith.select %276, %266, %247 : vector<8x32xi1>, vector<8x32xf32>
    %c9_i32 = arith.constant 9 : i32
    %278 = arith.index_cast %c9_i32 : i32 to index
    %c0_44 = arith.constant 0 : index
    %c0_45 = arith.constant 0 : index
    %279 = vector.load %arg3[%278, %c0_44, %c0_45] : memref<16x8x128xf32, #tpu.memory_space<vmem>>, vector<1x8x128xf32>
    %280 = vector.shape_cast %279 : vector<1x8x128xf32> to vector<8x128xf32>
    %281 = arith.truncf %274 : vector<8x32xf32> to vector<8x32xbf16>
    %cst_46 = arith.constant dense<0.000000e+00> : vector<8x128xf32>
    %282 = tpu.matmul %281, %3, %cst_46 {dimension_numbers = #tpu.dot_dimension_numbers<[1], [0], [0], [1], [0, 0, 1, 1], [], []>} : vector<8x32xbf16>, vector<32x128xbf16>, vector<8x128xf32> -> vector<8x128xf32>
    %283 = arith.addf %280, %282 : vector<8x128xf32>
    %284 = arith.negf %283 : vector<8x128xf32>
    %285 = math.exp %284 : vector<8x128xf32>
    %cst_47 = arith.constant 1.000000e+00 : f32
    %286 = vector.broadcast %cst_47 : f32 to vector<8x128xf32>
    %287 = arith.addf %286, %285 : vector<8x128xf32>
    %288 = arith.divf %286, %287 : vector<8x128xf32>
    %289 = math.tanh %283 : vector<8x128xf32>
    %290 = vector.extract_strided_slice %288 {offsets = [0, 0], sizes = [8, 32], strides = [1, 1]} : vector<8x128xf32> to vector<8x32xf32>
    %291 = vector.extract_strided_slice %288 {offsets = [0, 32], sizes = [8, 32], strides = [1, 1]} : vector<8x128xf32> to vector<8x32xf32>
    %292 = vector.extract_strided_slice %289 {offsets = [0, 64], sizes = [8, 32], strides = [1, 1]} : vector<8x128xf32> to vector<8x32xf32>
    %293 = vector.extract_strided_slice %288 {offsets = [0, 96], sizes = [8, 32], strides = [1, 1]} : vector<8x128xf32> to vector<8x32xf32>
    %294 = arith.mulf %291, %277 : vector<8x32xf32>
    %295 = arith.mulf %290, %292 : vector<8x32xf32>
    %296 = arith.addf %294, %295 : vector<8x32xf32>
    %297 = math.tanh %296 : vector<8x32xf32>
    %298 = arith.mulf %293, %297 : vector<8x32xf32>
    %299 = arith.addi %5, %c9_i32 : i32
    %300 = vector.broadcast %299 : i32 to vector<8x1xi32>
    %301 = arith.cmpi slt, %300, %4 : vector<8x1xi32>
    %302 = vector.shape_cast %301 : vector<8x1xi1> to vector<8x1xi1>
    %303 = vector.broadcast %302 : vector<8x1xi1> to vector<8x32xi1>
    %304 = arith.select %303, %298, %274 : vector<8x32xi1>, vector<8x32xf32>
    %305 = vector.shape_cast %301 : vector<8x1xi1> to vector<8x1xi1>
    %306 = vector.broadcast %305 : vector<8x1xi1> to vector<8x32xi1>
    %307 = arith.select %306, %296, %277 : vector<8x32xi1>, vector<8x32xf32>
    %c10_i32 = arith.constant 10 : i32
    %308 = arith.index_cast %c10_i32 : i32 to index
    %c0_48 = arith.constant 0 : index
    %c0_49 = arith.constant 0 : index
    %309 = vector.load %arg3[%308, %c0_48, %c0_49] : memref<16x8x128xf32, #tpu.memory_space<vmem>>, vector<1x8x128xf32>
    %310 = vector.shape_cast %309 : vector<1x8x128xf32> to vector<8x128xf32>
    %311 = arith.truncf %304 : vector<8x32xf32> to vector<8x32xbf16>
    %cst_50 = arith.constant dense<0.000000e+00> : vector<8x128xf32>
    %312 = tpu.matmul %311, %3, %cst_50 {dimension_numbers = #tpu.dot_dimension_numbers<[1], [0], [0], [1], [0, 0, 1, 1], [], []>} : vector<8x32xbf16>, vector<32x128xbf16>, vector<8x128xf32> -> vector<8x128xf32>
    %313 = arith.addf %310, %312 : vector<8x128xf32>
    %314 = arith.negf %313 : vector<8x128xf32>
    %315 = math.exp %314 : vector<8x128xf32>
    %cst_51 = arith.constant 1.000000e+00 : f32
    %316 = vector.broadcast %cst_51 : f32 to vector<8x128xf32>
    %317 = arith.addf %316, %315 : vector<8x128xf32>
    %318 = arith.divf %316, %317 : vector<8x128xf32>
    %319 = math.tanh %313 : vector<8x128xf32>
    %320 = vector.extract_strided_slice %318 {offsets = [0, 0], sizes = [8, 32], strides = [1, 1]} : vector<8x128xf32> to vector<8x32xf32>
    %321 = vector.extract_strided_slice %318 {offsets = [0, 32], sizes = [8, 32], strides = [1, 1]} : vector<8x128xf32> to vector<8x32xf32>
    %322 = vector.extract_strided_slice %319 {offsets = [0, 64], sizes = [8, 32], strides = [1, 1]} : vector<8x128xf32> to vector<8x32xf32>
    %323 = vector.extract_strided_slice %318 {offsets = [0, 96], sizes = [8, 32], strides = [1, 1]} : vector<8x128xf32> to vector<8x32xf32>
    %324 = arith.mulf %321, %307 : vector<8x32xf32>
    %325 = arith.mulf %320, %322 : vector<8x32xf32>
    %326 = arith.addf %324, %325 : vector<8x32xf32>
    %327 = math.tanh %326 : vector<8x32xf32>
    %328 = arith.mulf %323, %327 : vector<8x32xf32>
    %329 = arith.addi %5, %c10_i32 : i32
    %330 = vector.broadcast %329 : i32 to vector<8x1xi32>
    %331 = arith.cmpi slt, %330, %4 : vector<8x1xi32>
    %332 = vector.shape_cast %331 : vector<8x1xi1> to vector<8x1xi1>
    %333 = vector.broadcast %332 : vector<8x1xi1> to vector<8x32xi1>
    %334 = arith.select %333, %328, %304 : vector<8x32xi1>, vector<8x32xf32>
    %335 = vector.shape_cast %331 : vector<8x1xi1> to vector<8x1xi1>
    %336 = vector.broadcast %335 : vector<8x1xi1> to vector<8x32xi1>
    %337 = arith.select %336, %326, %307 : vector<8x32xi1>, vector<8x32xf32>
    %c11_i32 = arith.constant 11 : i32
    %338 = arith.index_cast %c11_i32 : i32 to index
    %c0_52 = arith.constant 0 : index
    %c0_53 = arith.constant 0 : index
    %339 = vector.load %arg3[%338, %c0_52, %c0_53] : memref<16x8x128xf32, #tpu.memory_space<vmem>>, vector<1x8x128xf32>
    %340 = vector.shape_cast %339 : vector<1x8x128xf32> to vector<8x128xf32>
    %341 = arith.truncf %334 : vector<8x32xf32> to vector<8x32xbf16>
    %cst_54 = arith.constant dense<0.000000e+00> : vector<8x128xf32>
    %342 = tpu.matmul %341, %3, %cst_54 {dimension_numbers = #tpu.dot_dimension_numbers<[1], [0], [0], [1], [0, 0, 1, 1], [], []>} : vector<8x32xbf16>, vector<32x128xbf16>, vector<8x128xf32> -> vector<8x128xf32>
    %343 = arith.addf %340, %342 : vector<8x128xf32>
    %344 = arith.negf %343 : vector<8x128xf32>
    %345 = math.exp %344 : vector<8x128xf32>
    %cst_55 = arith.constant 1.000000e+00 : f32
    %346 = vector.broadcast %cst_55 : f32 to vector<8x128xf32>
    %347 = arith.addf %346, %345 : vector<8x128xf32>
    %348 = arith.divf %346, %347 : vector<8x128xf32>
    %349 = math.tanh %343 : vector<8x128xf32>
    %350 = vector.extract_strided_slice %348 {offsets = [0, 0], sizes = [8, 32], strides = [1, 1]} : vector<8x128xf32> to vector<8x32xf32>
    %351 = vector.extract_strided_slice %348 {offsets = [0, 32], sizes = [8, 32], strides = [1, 1]} : vector<8x128xf32> to vector<8x32xf32>
    %352 = vector.extract_strided_slice %349 {offsets = [0, 64], sizes = [8, 32], strides = [1, 1]} : vector<8x128xf32> to vector<8x32xf32>
    %353 = vector.extract_strided_slice %348 {offsets = [0, 96], sizes = [8, 32], strides = [1, 1]} : vector<8x128xf32> to vector<8x32xf32>
    %354 = arith.mulf %351, %337 : vector<8x32xf32>
    %355 = arith.mulf %350, %352 : vector<8x32xf32>
    %356 = arith.addf %354, %355 : vector<8x32xf32>
    %357 = math.tanh %356 : vector<8x32xf32>
    %358 = arith.mulf %353, %357 : vector<8x32xf32>
    %359 = arith.addi %5, %c11_i32 : i32
    %360 = vector.broadcast %359 : i32 to vector<8x1xi32>
    %361 = arith.cmpi slt, %360, %4 : vector<8x1xi32>
    %362 = vector.shape_cast %361 : vector<8x1xi1> to vector<8x1xi1>
    %363 = vector.broadcast %362 : vector<8x1xi1> to vector<8x32xi1>
    %364 = arith.select %363, %358, %334 : vector<8x32xi1>, vector<8x32xf32>
    %365 = vector.shape_cast %361 : vector<8x1xi1> to vector<8x1xi1>
    %366 = vector.broadcast %365 : vector<8x1xi1> to vector<8x32xi1>
    %367 = arith.select %366, %356, %337 : vector<8x32xi1>, vector<8x32xf32>
    %c12_i32 = arith.constant 12 : i32
    %368 = arith.index_cast %c12_i32 : i32 to index
    %c0_56 = arith.constant 0 : index
    %c0_57 = arith.constant 0 : index
    %369 = vector.load %arg3[%368, %c0_56, %c0_57] : memref<16x8x128xf32, #tpu.memory_space<vmem>>, vector<1x8x128xf32>
    %370 = vector.shape_cast %369 : vector<1x8x128xf32> to vector<8x128xf32>
    %371 = arith.truncf %364 : vector<8x32xf32> to vector<8x32xbf16>
    %cst_58 = arith.constant dense<0.000000e+00> : vector<8x128xf32>
    %372 = tpu.matmul %371, %3, %cst_58 {dimension_numbers = #tpu.dot_dimension_numbers<[1], [0], [0], [1], [0, 0, 1, 1], [], []>} : vector<8x32xbf16>, vector<32x128xbf16>, vector<8x128xf32> -> vector<8x128xf32>
    %373 = arith.addf %370, %372 : vector<8x128xf32>
    %374 = arith.negf %373 : vector<8x128xf32>
    %375 = math.exp %374 : vector<8x128xf32>
    %cst_59 = arith.constant 1.000000e+00 : f32
    %376 = vector.broadcast %cst_59 : f32 to vector<8x128xf32>
    %377 = arith.addf %376, %375 : vector<8x128xf32>
    %378 = arith.divf %376, %377 : vector<8x128xf32>
    %379 = math.tanh %373 : vector<8x128xf32>
    %380 = vector.extract_strided_slice %378 {offsets = [0, 0], sizes = [8, 32], strides = [1, 1]} : vector<8x128xf32> to vector<8x32xf32>
    %381 = vector.extract_strided_slice %378 {offsets = [0, 32], sizes = [8, 32], strides = [1, 1]} : vector<8x128xf32> to vector<8x32xf32>
    %382 = vector.extract_strided_slice %379 {offsets = [0, 64], sizes = [8, 32], strides = [1, 1]} : vector<8x128xf32> to vector<8x32xf32>
    %383 = vector.extract_strided_slice %378 {offsets = [0, 96], sizes = [8, 32], strides = [1, 1]} : vector<8x128xf32> to vector<8x32xf32>
    %384 = arith.mulf %381, %367 : vector<8x32xf32>
    %385 = arith.mulf %380, %382 : vector<8x32xf32>
    %386 = arith.addf %384, %385 : vector<8x32xf32>
    %387 = math.tanh %386 : vector<8x32xf32>
    %388 = arith.mulf %383, %387 : vector<8x32xf32>
    %389 = arith.addi %5, %c12_i32 : i32
    %390 = vector.broadcast %389 : i32 to vector<8x1xi32>
    %391 = arith.cmpi slt, %390, %4 : vector<8x1xi32>
    %392 = vector.shape_cast %391 : vector<8x1xi1> to vector<8x1xi1>
    %393 = vector.broadcast %392 : vector<8x1xi1> to vector<8x32xi1>
    %394 = arith.select %393, %388, %364 : vector<8x32xi1>, vector<8x32xf32>
    %395 = vector.shape_cast %391 : vector<8x1xi1> to vector<8x1xi1>
    %396 = vector.broadcast %395 : vector<8x1xi1> to vector<8x32xi1>
    %397 = arith.select %396, %386, %367 : vector<8x32xi1>, vector<8x32xf32>
    %c13_i32 = arith.constant 13 : i32
    %398 = arith.index_cast %c13_i32 : i32 to index
    %c0_60 = arith.constant 0 : index
    %c0_61 = arith.constant 0 : index
    %399 = vector.load %arg3[%398, %c0_60, %c0_61] : memref<16x8x128xf32, #tpu.memory_space<vmem>>, vector<1x8x128xf32>
    %400 = vector.shape_cast %399 : vector<1x8x128xf32> to vector<8x128xf32>
    %401 = arith.truncf %394 : vector<8x32xf32> to vector<8x32xbf16>
    %cst_62 = arith.constant dense<0.000000e+00> : vector<8x128xf32>
    %402 = tpu.matmul %401, %3, %cst_62 {dimension_numbers = #tpu.dot_dimension_numbers<[1], [0], [0], [1], [0, 0, 1, 1], [], []>} : vector<8x32xbf16>, vector<32x128xbf16>, vector<8x128xf32> -> vector<8x128xf32>
    %403 = arith.addf %400, %402 : vector<8x128xf32>
    %404 = arith.negf %403 : vector<8x128xf32>
    %405 = math.exp %404 : vector<8x128xf32>
    %cst_63 = arith.constant 1.000000e+00 : f32
    %406 = vector.broadcast %cst_63 : f32 to vector<8x128xf32>
    %407 = arith.addf %406, %405 : vector<8x128xf32>
    %408 = arith.divf %406, %407 : vector<8x128xf32>
    %409 = math.tanh %403 : vector<8x128xf32>
    %410 = vector.extract_strided_slice %408 {offsets = [0, 0], sizes = [8, 32], strides = [1, 1]} : vector<8x128xf32> to vector<8x32xf32>
    %411 = vector.extract_strided_slice %408 {offsets = [0, 32], sizes = [8, 32], strides = [1, 1]} : vector<8x128xf32> to vector<8x32xf32>
    %412 = vector.extract_strided_slice %409 {offsets = [0, 64], sizes = [8, 32], strides = [1, 1]} : vector<8x128xf32> to vector<8x32xf32>
    %413 = vector.extract_strided_slice %408 {offsets = [0, 96], sizes = [8, 32], strides = [1, 1]} : vector<8x128xf32> to vector<8x32xf32>
    %414 = arith.mulf %411, %397 : vector<8x32xf32>
    %415 = arith.mulf %410, %412 : vector<8x32xf32>
    %416 = arith.addf %414, %415 : vector<8x32xf32>
    %417 = math.tanh %416 : vector<8x32xf32>
    %418 = arith.mulf %413, %417 : vector<8x32xf32>
    %419 = arith.addi %5, %c13_i32 : i32
    %420 = vector.broadcast %419 : i32 to vector<8x1xi32>
    %421 = arith.cmpi slt, %420, %4 : vector<8x1xi32>
    %422 = vector.shape_cast %421 : vector<8x1xi1> to vector<8x1xi1>
    %423 = vector.broadcast %422 : vector<8x1xi1> to vector<8x32xi1>
    %424 = arith.select %423, %418, %394 : vector<8x32xi1>, vector<8x32xf32>
    %425 = vector.shape_cast %421 : vector<8x1xi1> to vector<8x1xi1>
    %426 = vector.broadcast %425 : vector<8x1xi1> to vector<8x32xi1>
    %427 = arith.select %426, %416, %397 : vector<8x32xi1>, vector<8x32xf32>
    %c14_i32 = arith.constant 14 : i32
    %428 = arith.index_cast %c14_i32 : i32 to index
    %c0_64 = arith.constant 0 : index
    %c0_65 = arith.constant 0 : index
    %429 = vector.load %arg3[%428, %c0_64, %c0_65] : memref<16x8x128xf32, #tpu.memory_space<vmem>>, vector<1x8x128xf32>
    %430 = vector.shape_cast %429 : vector<1x8x128xf32> to vector<8x128xf32>
    %431 = arith.truncf %424 : vector<8x32xf32> to vector<8x32xbf16>
    %cst_66 = arith.constant dense<0.000000e+00> : vector<8x128xf32>
    %432 = tpu.matmul %431, %3, %cst_66 {dimension_numbers = #tpu.dot_dimension_numbers<[1], [0], [0], [1], [0, 0, 1, 1], [], []>} : vector<8x32xbf16>, vector<32x128xbf16>, vector<8x128xf32> -> vector<8x128xf32>
    %433 = arith.addf %430, %432 : vector<8x128xf32>
    %434 = arith.negf %433 : vector<8x128xf32>
    %435 = math.exp %434 : vector<8x128xf32>
    %cst_67 = arith.constant 1.000000e+00 : f32
    %436 = vector.broadcast %cst_67 : f32 to vector<8x128xf32>
    %437 = arith.addf %436, %435 : vector<8x128xf32>
    %438 = arith.divf %436, %437 : vector<8x128xf32>
    %439 = math.tanh %433 : vector<8x128xf32>
    %440 = vector.extract_strided_slice %438 {offsets = [0, 0], sizes = [8, 32], strides = [1, 1]} : vector<8x128xf32> to vector<8x32xf32>
    %441 = vector.extract_strided_slice %438 {offsets = [0, 32], sizes = [8, 32], strides = [1, 1]} : vector<8x128xf32> to vector<8x32xf32>
    %442 = vector.extract_strided_slice %439 {offsets = [0, 64], sizes = [8, 32], strides = [1, 1]} : vector<8x128xf32> to vector<8x32xf32>
    %443 = vector.extract_strided_slice %438 {offsets = [0, 96], sizes = [8, 32], strides = [1, 1]} : vector<8x128xf32> to vector<8x32xf32>
    %444 = arith.mulf %441, %427 : vector<8x32xf32>
    %445 = arith.mulf %440, %442 : vector<8x32xf32>
    %446 = arith.addf %444, %445 : vector<8x32xf32>
    %447 = math.tanh %446 : vector<8x32xf32>
    %448 = arith.mulf %443, %447 : vector<8x32xf32>
    %449 = arith.addi %5, %c14_i32 : i32
    %450 = vector.broadcast %449 : i32 to vector<8x1xi32>
    %451 = arith.cmpi slt, %450, %4 : vector<8x1xi32>
    %452 = vector.shape_cast %451 : vector<8x1xi1> to vector<8x1xi1>
    %453 = vector.broadcast %452 : vector<8x1xi1> to vector<8x32xi1>
    %454 = arith.select %453, %448, %424 : vector<8x32xi1>, vector<8x32xf32>
    %455 = vector.shape_cast %451 : vector<8x1xi1> to vector<8x1xi1>
    %456 = vector.broadcast %455 : vector<8x1xi1> to vector<8x32xi1>
    %457 = arith.select %456, %446, %427 : vector<8x32xi1>, vector<8x32xf32>
    %c15_i32 = arith.constant 15 : i32
    %458 = arith.index_cast %c15_i32 : i32 to index
    %c0_68 = arith.constant 0 : index
    %c0_69 = arith.constant 0 : index
    %459 = vector.load %arg3[%458, %c0_68, %c0_69] : memref<16x8x128xf32, #tpu.memory_space<vmem>>, vector<1x8x128xf32>
    %460 = vector.shape_cast %459 : vector<1x8x128xf32> to vector<8x128xf32>
    %461 = arith.truncf %454 : vector<8x32xf32> to vector<8x32xbf16>
    %cst_70 = arith.constant dense<0.000000e+00> : vector<8x128xf32>
    %462 = tpu.matmul %461, %3, %cst_70 {dimension_numbers = #tpu.dot_dimension_numbers<[1], [0], [0], [1], [0, 0, 1, 1], [], []>} : vector<8x32xbf16>, vector<32x128xbf16>, vector<8x128xf32> -> vector<8x128xf32>
    %463 = arith.addf %460, %462 : vector<8x128xf32>
    %464 = arith.negf %463 : vector<8x128xf32>
    %465 = math.exp %464 : vector<8x128xf32>
    %cst_71 = arith.constant 1.000000e+00 : f32
    %466 = vector.broadcast %cst_71 : f32 to vector<8x128xf32>
    %467 = arith.addf %466, %465 : vector<8x128xf32>
    %468 = arith.divf %466, %467 : vector<8x128xf32>
    %469 = math.tanh %463 : vector<8x128xf32>
    %470 = vector.extract_strided_slice %468 {offsets = [0, 0], sizes = [8, 32], strides = [1, 1]} : vector<8x128xf32> to vector<8x32xf32>
    %471 = vector.extract_strided_slice %468 {offsets = [0, 32], sizes = [8, 32], strides = [1, 1]} : vector<8x128xf32> to vector<8x32xf32>
    %472 = vector.extract_strided_slice %469 {offsets = [0, 64], sizes = [8, 32], strides = [1, 1]} : vector<8x128xf32> to vector<8x32xf32>
    %473 = vector.extract_strided_slice %468 {offsets = [0, 96], sizes = [8, 32], strides = [1, 1]} : vector<8x128xf32> to vector<8x32xf32>
    %474 = arith.mulf %471, %457 : vector<8x32xf32>
    %475 = arith.mulf %470, %472 : vector<8x32xf32>
    %476 = arith.addf %474, %475 : vector<8x32xf32>
    %477 = math.tanh %476 : vector<8x32xf32>
    %478 = arith.mulf %473, %477 : vector<8x32xf32>
    %479 = arith.addi %5, %c15_i32 : i32
    %480 = vector.broadcast %479 : i32 to vector<8x1xi32>
    %481 = arith.cmpi slt, %480, %4 : vector<8x1xi32>
    %482 = vector.shape_cast %481 : vector<8x1xi1> to vector<8x1xi1>
    %483 = vector.broadcast %482 : vector<8x1xi1> to vector<8x32xi1>
    %484 = arith.select %483, %478, %454 : vector<8x32xi1>, vector<8x32xf32>
    %485 = vector.shape_cast %481 : vector<8x1xi1> to vector<8x1xi1>
    %486 = vector.broadcast %485 : vector<8x1xi1> to vector<8x32xi1>
    %487 = arith.select %486, %476, %457 : vector<8x32xi1>, vector<8x32xf32>
    %c16_i32_72 = arith.constant 16 : i32
    %c0_73 = arith.constant 0 : index
    %c0_74 = arith.constant 0 : index
    %488 = vector.load %arg8[%c0_73, %c0_74] : memref<8x32xf32, #tpu.memory_space<vmem>>, vector<8x32xf32>
    tpu.vector_store %arg8[%c0_73, %c0_74], %484 {strides = array<i32>} : memref<8x32xf32, #tpu.memory_space<vmem>>, vector<8x32xf32>,
    %c0_75 = arith.constant 0 : index
    %c0_76 = arith.constant 0 : index
    %489 = vector.load %arg9[%c0_75, %c0_76] : memref<8x32xf32, #tpu.memory_space<vmem>>, vector<8x32xf32>
    tpu.vector_store %arg9[%c0_75, %c0_76], %487 {strides = array<i32>} : memref<8x32xf32, #tpu.memory_space<vmem>>, vector<8x32xf32>,
    %c0_i32_77 = arith.constant 0 : i32
    %490 = arith.cmpi eq, %arg1, %c0_i32_77 : i32
    %491 = arith.extui %490 : i1 to i32
    %c0_i32_78 = arith.constant 0 : i32
    %492 = arith.cmpi ne, %491, %c0_i32_78 : i32
    scf.if %492 {
      %493 = arith.truncf %484 : vector<8x32xf32> to vector<8x32xbf16>
      %c0_79 = arith.constant 0 : index
      %c0_80 = arith.constant 0 : index
      %494 = vector.load %arg5[%c0_79, %c0_80] : memref<32x128xbf16, #tpu.memory_space<vmem>>, vector<32x128xbf16>
      %cst_81 = arith.constant dense<0.000000e+00> : vector<8x128xf32>
      %495 = tpu.matmul %493, %494, %cst_81 {dimension_numbers = #tpu.dot_dimension_numbers<[1], [0], [0], [1], [0, 0, 1, 1], [], []>} : vector<8x32xbf16>, vector<32x128xbf16>, vector<8x128xf32> -> vector<8x128xf32>
      %c0_82 = arith.constant 0 : index
      %c0_83 = arith.constant 0 : index
      %496 = vector.load %arg6[%c0_82, %c0_83] : memref<1x128xf32, #tpu.memory_space<vmem>>, vector<1x128xf32>
      %497 = vector.broadcast %496 : vector<1x128xf32> to vector<8x128xf32>
      %498 = arith.addf %495, %497 : vector<8x128xf32>
      %c0_84 = arith.constant 0 : index
      %c0_85 = arith.constant 0 : index
      %499 = vector.load %arg7[%c0_84, %c0_85] : memref<8x128xf32, #tpu.memory_space<vmem>>, vector<8x128xf32>
      tpu.vector_store %arg7[%c0_84, %c0_85], %498 {strides = array<i32>} : memref<8x128xf32, #tpu.memory_space<vmem>>, vector<8x128xf32>,
    } else {
    }
    return
  }
  func.func @transform_0(%arg0: i32, %arg1: i32) -> (i32, i32) {
    %c0_i32 = arith.constant 0 : i32
    %c0_i32_0 = arith.constant 0 : i32
    return %arg0, %c0_i32 : i32, i32
  }
  func.func @transform_1(%arg0: i32, %arg1: i32) -> (i32, i32, i32) {
    %c0_i32 = arith.constant 0 : i32
    %c0_i32_0 = arith.constant 0 : i32
    return %arg1, %arg0, %c0_i32 : i32, i32, i32
  }
  func.func @transform_2(%arg0: i32, %arg1: i32) -> (i32, i32) {
    %c0_i32 = arith.constant 0 : i32
    %c0_i32_0 = arith.constant 0 : i32
    %c0_i32_1 = arith.constant 0 : i32
    return %c0_i32, %c0_i32_0 : i32, i32
  }
  func.func @transform_3(%arg0: i32, %arg1: i32) -> (i32, i32) {
    %c0_i32 = arith.constant 0 : i32
    %c0_i32_0 = arith.constant 0 : i32
    %c0_i32_1 = arith.constant 0 : i32
    return %c0_i32, %c0_i32_0 : i32, i32
  }
  func.func @transform_4(%arg0: i32, %arg1: i32) -> (i32, i32) {
    %c0_i32 = arith.constant 0 : i32
    %c0_i32_0 = arith.constant 0 : i32
    %c0_i32_1 = arith.constant 0 : i32
    return %c0_i32, %c0_i32_0 : i32, i32
  }
  func.func @transform_5(%arg0: i32, %arg1: i32) -> (i32, i32) {
    %c0_i32 = arith.constant 0 : i32
    %c0_i32_0 = arith.constant 0 : i32
    return %arg0, %c0_i32 : i32, i32
  }
}

</mosaic_0001>

<llo_original>
// kernel: lstm_forward.1
$region0: #{lstm_forward.1}
  #allocation0 [shape = 'u32[]', space=smem, size = 0x4, offset = 0x4, fixed_abs, tag = 'smem constant byte address 0x4 - core index']
  #allocation1 [shape = 'u32[144,128]{1,0:T(1,128)}', space=vmem, size = 0x12000, scoped, tag = 'internal scratch']
  #allocation2 [shape = 'f32[8,32]{1,0:T(8,128)}', space=vmem, size = 0x1000, scoped, tag = 'scratch operand']
  #allocation3 [shape = 'f32[8,32]{1,0:T(8,128)}', space=vmem, size = 0x1000, scoped, tag = 'scratch operand']
  %s0 = inlined_call_operand.vmem [shape: s32[8,1], index: 0, kind: input, shape index: {}]
  %s1 = inlined_call_operand.vmem [shape: f32[16,8,128], index: 1, kind: input, shape index: {}]
  %s2 = inlined_call_operand.vmem [shape: bf16[32,128], index: 2, kind: input, shape index: {}]
  %s3 = inlined_call_operand.vmem [shape: bf16[32,128], index: 3, kind: input, shape index: {}]
  %s4 = inlined_call_operand.vmem [shape: f32[1,128], index: 4, kind: input, shape index: {}]
  %s5 = inlined_call_operand.vmem [shape: f32[8,128], index: 5, kind: output, shape index: {}]
  %s6 = sld [smem:[#allocation0]]
  $region38: #{lstm_forward.1} parent=0
    _
  %s8 = ssub.s32 1, %s6
  %s9 = scalar_select 0, %s8, %s6
  // Predicated region
  $region2: #{lstm_forward.1} parent=0 // pred_check
    _
  $region3: #{lstm_forward.1} parent=0 // pred_check_branch
    %11 = sbr.rel (0) target = $region5
  $region4: #{lstm_forward.1} parent=0 // pred_region
    _
  $region5: #{lstm_forward.1} parent=0 // pred_fallthru
    _
  // Predicated region
  $region6: #{lstm_forward.1} parent=0 // pred_check
    _
  $region7: #{lstm_forward.1} parent=0 // pred_check_branch
    %13 = sbr.rel (0) target = $region9
  $region8: #{lstm_forward.1} parent=0 // pred_region
    _
  $region9: #{lstm_forward.1} parent=0 // pred_fallthru
    _
  // Predicated region
  $region10: #{lstm_forward.1} parent=0 // pred_check
    _
  $region11: #{lstm_forward.1} parent=0 // pred_check_branch
    %15 = sbr.rel (0) target = $region13
  $region12: #{lstm_forward.1} parent=0 // pred_region
    _
  $region13: #{lstm_forward.1} parent=0 // pred_fallthru
    _
  // Predicated region
  $region14: #{lstm_forward.1} parent=0 // pred_check
    _
  $region15: #{lstm_forward.1} parent=0 // pred_check_branch
    %17 = sbr.rel (0) target = $region17
  $region16: #{lstm_forward.1} parent=0 // pred_region
    _
  $region17: #{lstm_forward.1} parent=0 // pred_fallthru
    _
  // Predicated region
  $region18: #{lstm_forward.1} parent=0 // pred_check
    _
  $region19: #{lstm_forward.1} parent=0 // pred_check_branch
    %19 = sbr.rel (0) target = $region21
  $region20: #{lstm_forward.1} parent=0 // pred_region
    _
  $region21: #{lstm_forward.1} parent=0 // pred_fallthru
    _
  %p21 = scmp.eq.s32.totalorder 0, 0
  // Predicated region
  $region22: #{lstm_forward.1} parent=0 // pred_check
    %p22 = pneg %p21
  $region23: #{lstm_forward.1} parent=0 // pred_check_branch
    %24 = sbr.rel (%p22) target = $region25
  $region24: #{lstm_forward.1} parent=0 // pred_region
    %vm25 = vcmask 261120
    %26 = vst.msk [vmem:[#allocation2] sm:$0xff] %vm25, 0.0
    %27 = vst.msk [vmem:[#allocation3] sm:$0xff] %vm25, 0.0
  $region25: #{lstm_forward.1} parent=0 // pred_fallthru
    _
  %v28 = vld [vmem:[%s2] sm:$0xf]
  %v29 = vld [vmem:[%s2 + $0x4] sm:$0xf]
  %v30 = vld [vmem:[%s2 + $0x8] sm:$0xf]
  %v31 = vld [vmem:[%s2 + $0xc] sm:$0xf]
  %v32 = vld [vmem:[%s0] sm:$0xff]
  %s33 = smul.u32 0, 16
  %v34 = vld [vmem:[#allocation2] sm:$0xff]
  %v35 = vld [vmem:[#allocation3] sm:$0xff]
  %v36 = vld [vmem:[%s1] sm:$0xff]
  %v37 = vpack.c.bf16 %v34, %v34
  %v42 = vunpack.c.l.b16 %v28
  %v43 = vunpack.c.l.b16 %v29
  %v44 = vunpack.c.l.b16 %v30
  %v45 = vunpack.c.l.b16 %v31
  %v46 = vpack.c.b16 %v43, %v42
  %v47 = vpack.c.b16 %v45, %v44
  %vm50 = vcmask 261120
  %v52 = vsel %vm50, %v37, 0
  %54 = vmatprep.subr.bf16.mxu0 0
  %55 = vmatpush1.bf16.msra.mxu0 %v46
  %56 = vmatprep.subr.bf16.mxu0 0
  %57 = vmatpush1.bf16.msra.mxu0 %v47
  %58 = vmatprep.subr.bf16.mxu0 0
  %59 = vmatpush1.bf16.msra.mxu0 0
  %60 = vmatprep.subr.bf16.mxu0 0
  %61 = vmatpush1.bf16.msra.mxu0 0
  %62 = vmatprep.subr.bf16.mxu0 0
  %63 = vmatpush1.bf16.msra.mxu0 0
  %64 = vmatprep.subr.bf16.mxu0 0
  %65 = vmatpush1.bf16.msra.mxu0 0
  %66 = vmatprep.subr.bf16.mxu0 0
  %67 = vmatpush1.bf16.msra.mxu0 0
  %68 = vmatprep.subr.bf16.mxu0 0
  %69 = vmatpush1.bf16.msra.mxu0 0
  %70 = vmatprep.subr.bf16.mxu0 0
  %71 = vmatpush1.bf16.msra.mxu0 0
  %72 = vmatprep.subr.bf16.mxu0 0
  %73 = vmatpush1.bf16.msra.mxu0 0
  %74 = vmatprep.subr.bf16.mxu0 0
  %75 = vmatpush1.bf16.msra.mxu0 0
  %76 = vmatprep.subr.bf16.mxu0 0
  %77 = vmatpush1.bf16.msra.mxu0 0
  %78 = vmatprep.subr.bf16.mxu0 0
  %79 = vmatpush1.bf16.msra.mxu0 0
  %80 = vmatprep.subr.bf16.mxu0 0
  %81 = vmatpush1.bf16.msra.mxu0 0
  %82 = vmatprep.subr.bf16.mxu0 0
  %83 = vmatpush1.bf16.msra.mxu0 0
  %84 = vmatprep.subr.bf16.mxu0 0
  %85 = vmatpush1.bf16.msra.mxu0 0
  %86 = vmatprep.mubr.bf16.mxu0 0
  %87 = vmatmul.mubr.bf16.gmra.mrb[0].mxu0 %v52
  %v88 = vpop.f32.mrb[0].mxu0
  %v89 = vadd.f32 0.0, %v88
  %v90 = vpop.f32.mrb[0].mxu0
  %v91 = vpop.f32.mrb[0].mxu0
  %v92 = vpop.f32.mrb[0].mxu0
  %93 = vdwg.mxu0
  %v94 = vadd.f32 %v36, %v89
  %v95 = vxor.u32 %v94, 2147483648
  %v96 = vmul.f32 %v95, 1.442695
  %v97 = vpow.pop %v96
  %v98 = vadd.f32 %v97, 1.0
  %v99 = vrcp.pop %v98
  %v100 = vmul.f32 1.0, %v99
  %v101 = vtanh.pop %v94
  %103 = vrot.lane.b32.xlu0 %v35, 32
  %v104 = vpop.permute.xlu0 %103
  %v106 = vmul.f32 %v100, %v104
  %108 = vrot.lane.b32.xlu0 %v101, 64
  %v109 = vpop.permute.xlu0 %108
  %v111 = vmul.f32 %v100, %v109
  %113 = vrot.lane.b32.xlu0 %v111, 32
  %v114 = vpop.permute.xlu0 %113
  %v116 = vadd.f32 %v106, %v114
  %v117 = vtanh.pop %v116
  %119 = vrot.lane.b32.xlu0 %v117, 64
  %v120 = vpop.permute.xlu0 %119
  %v122 = vmul.f32 %v100, %v120
  %v123 = vstv %s33
  %vm124 = vcmp.lt.s32.totalorder %v123, %v32
  %v125 = vsel %vm124, 1, 0
  %126 = vset.pattern.permute.xlu0 0
  %127 = vperm.xlu0 %126, %v125
  %v128 = vpop.permute.xlu0 %127
  %vm129 = vcmp.eq.s32.totalorder %v128, 1
  %131 = vrot.lane.b32.xlu0 %v34, 96
  %v132 = vpop.permute.xlu0 %131
  %v134 = vsel %vm129, %v122, %v132
  %v135 = vsel %vm129, %v116, %v104
  %s136 = scalar_lea.vmem %s1, 8
  %v137 = vld [vmem:[%s136] sm:$0xff]
  %v138 = vpack.c.bf16 %v134, %v134
  %140 = vrot.lane.b32.xlu0 %v138, 32
  %v141 = vpop.permute.xlu0 %140
  %v143 = vsel %vm50, %v141, 0
  %145 = vmatprep.subr.bf16.mxu0 0
  %146 = vmatpush1.bf16.msra.mxu0 %v46
  %147 = vmatprep.subr.bf16.mxu0 0
  %148 = vmatpush1.bf16.msra.mxu0 %v47
  %149 = vmatprep.subr.bf16.mxu0 0
  %150 = vmatpush1.bf16.msra.mxu0 0
  %151 = vmatprep.subr.bf16.mxu0 0
  %152 = vmatpush1.bf16.msra.mxu0 0
  %153 = vmatprep.subr.bf16.mxu0 0
  %154 = vmatpush1.bf16.msra.mxu0 0
  %155 = vmatprep.subr.bf16.mxu0 0
  %156 = vmatpush1.bf16.msra.mxu0 0
  %157 = vmatprep.subr.bf16.mxu0 0
  %158 = vmatpush1.bf16.msra.mxu0 0
  %159 = vmatprep.subr.bf16.mxu0 0
  %160 = vmatpush1.bf16.msra.mxu0 0
  %161 = vmatprep.subr.bf16.mxu0 0
  %162 = vmatpush1.bf16.msra.mxu0 0
  %163 = vmatprep.subr.bf16.mxu0 0
  %164 = vmatpush1.bf16.msra.mxu0 0
  %165 = vmatprep.subr.bf16.mxu0 0
  %166 = vmatpush1.bf16.msra.mxu0 0
  %167 = vmatprep.subr.bf16.mxu0 0
  %168 = vmatpush1.bf16.msra.mxu0 0
  %169 = vmatprep.subr.bf16.mxu0 0
  %170 = vmatpush1.bf16.msra.mxu0 0
  %171 = vmatprep.subr.bf16.mxu0 0
  %172 = vmatpush1.bf16.msra.mxu0 0
  %173 = vmatprep.subr.bf16.mxu0 0
  %174 = vmatpush1.bf16.msra.mxu0 0
  %175 = vmatprep.subr.bf16.mxu0 0
  %176 = vmatpush1.bf16.msra.mxu0 0
  %177 = vmatprep.mubr.bf16.mxu0 0
  %178 = vmatmul.mubr.bf16.gmra.mrb[0].mxu0 %v143
  %v179 = vpop.f32.mrb[0].mxu0
  %v180 = vadd.f32 0.0, %v179
  %v181 = vpop.f32.mrb[0].mxu0
  %v182 = vpop.f32.mrb[0].mxu0
  %v183 = vpop.f32.mrb[0].mxu0
  %184 = vdwg.mxu0
  %v185 = vadd.f32 %v137, %v180
  %v186 = vxor.u32 %v185, 2147483648
  %v187 = vmul.f32 %v186, 1.442695
  %v188 = vpow.pop %v187
  %v189 = vadd.f32 %v188, 1.0
  %v190 = vrcp.pop %v189
  %v191 = vmul.f32 1.0, %v190
  %v192 = vtanh.pop %v185
  %v193 = vmul.f32 %v191, %v135
  %195 = vrot.lane.b32.xlu0 %v192, 64
  %v196 = vpop.permute.xlu0 %195
  %v198 = vmul.f32 %v191, %v196
  %200 = vrot.lane.b32.xlu0 %v198, 32
  %v201 = vpop.permute.xlu0 %200
  %v203 = vadd.f32 %v193, %v201
  %v204 = vtanh.pop %v203
  %206 = vrot.lane.b32.xlu0 %v204, 64
  %v207 = vpop.permute.xlu0 %206
  %v209 = vmul.f32 %v191, %v207
  %s210 = sadd.s32 %s33, 1
  %v211 = vstv %s210
  %vm212 = vcmp.lt.s32.totalorder %v211, %v32
  %v213 = vsel %vm212, 1, 0
  %214 = vset.pattern.permute.xlu0 0
  %215 = vperm.xlu0 %214, %v213
  %v216 = vpop.permute.xlu0 %215
  %vm217 = vcmp.eq.s32.totalorder %v216, 1
  %v218 = vsel %vm217, %v209, %v134
  %v219 = vsel %vm217, %v203, %v135
  %s220 = scalar_lea.vmem %s1, 16
  %v221 = vld [vmem:[%s220] sm:$0xff]
  %v222 = vpack.c.bf16 %v218, %v218
  %224 = vrot.lane.b32.xlu0 %v222, 32
  %v225 = vpop.permute.xlu0 %224
  %v227 = vsel %vm50, %v225, 0
  %229 = vmatprep.subr.bf16.mxu0 0
  %230 = vmatpush1.bf16.msra.mxu0 %v46
  %231 = vmatprep.subr.bf16.mxu0 0
  %232 = vmatpush1.bf16.msra.mxu0 %v47
  %233 = vmatprep.subr.bf16.mxu0 0
  %234 = vmatpush1.bf16.msra.mxu0 0
  %235 = vmatprep.subr.bf16.mxu0 0
  %236 = vmatpush1.bf16.msra.mxu0 0
  %237 = vmatprep.subr.bf16.mxu0 0
  %238 = vmatpush1.bf16.msra.mxu0 0
  %239 = vmatprep.subr.bf16.mxu0 0
  %240 = vmatpush1.bf16.msra.mxu0 0
  %241 = vmatprep.subr.bf16.mxu0 0
  %242 = vmatpush1.bf16.msra.mxu0 0
  %243 = vmatprep.subr.bf16.mxu0 0
  %244 = vmatpush1.bf16.msra.mxu0 0
  %245 = vmatprep.subr.bf16.mxu0 0
  %246 = vmatpush1.bf16.msra.mxu0 0
  %247 = vmatprep.subr.bf16.mxu0 0
  %248 = vmatpush1.bf16.msra.mxu0 0
  %249 = vmatprep.subr.bf16.mxu0 0
  %250 = vmatpush1.bf16.msra.mxu0 0
  %251 = vmatprep.subr.bf16.mxu0 0
  %252 = vmatpush1.bf16.msra.mxu0 0
  %253 = vmatprep.subr.bf16.mxu0 0
  %254 = vmatpush1.bf16.msra.mxu0 0
  %255 = vmatprep.subr.bf16.mxu0 0
  %256 = vmatpush1.bf16.msra.mxu0 0
  %257 = vmatprep.subr.bf16.mxu0 0
  %258 = vmatpush1.bf16.msra.mxu0 0
  %259 = vmatprep.subr.bf16.mxu0 0
  %260 = vmatpush1.bf16.msra.mxu0 0
  %261 = vmatprep.mubr.bf16.mxu0 0
  %262 = vmatmul.mubr.bf16.gmra.mrb[0].mxu0 %v227
  %v263 = vpop.f32.mrb[0].mxu0
  %v264 = vadd.f32 0.0, %v263
  %v265 = vpop.f32.mrb[0].mxu0
  %v266 = vpop.f32.mrb[0].mxu0
  %v267 = vpop.f32.mrb[0].mxu0
  %268 = vdwg.mxu0
  %v269 = vadd.f32 %v221, %v264
  %v270 = vxor.u32 %v269, 2147483648
  %v271 = vmul.f32 %v270, 1.442695
  %v272 = vpow.pop %v271
  %v273 = vadd.f32 %v272, 1.0
  %v274 = vrcp.pop %v273
  %v275 = vmul.f32 1.0, %v274
  %v276 = vtanh.pop %v269
  %v277 = vmul.f32 %v275, %v219
  %279 = vrot.lane.b32.xlu0 %v276, 64
  %v280 = vpop.permute.xlu0 %279
  %v282 = vmul.f32 %v275, %v280
  %284 = vrot.lane.b32.xlu0 %v282, 32
  %v285 = vpop.permute.xlu0 %284
  %v287 = vadd.f32 %v277, %v285
  %v288 = vtanh.pop %v287
  %290 = vrot.lane.b32.xlu0 %v288, 64
  %v291 = vpop.permute.xlu0 %290
  %v293 = vmul.f32 %v275, %v291
  %s294 = sadd.s32 %s33, 2
  %v295 = vstv %s294
  %vm296 = vcmp.lt.s32.totalorder %v295, %v32
  %v297 = vsel %vm296, 1, 0
  %298 = vset.pattern.permute.xlu0 0
  %299 = vperm.xlu0 %298, %v297
  %v300 = vpop.permute.xlu0 %299
  %vm301 = vcmp.eq.s32.totalorder %v300, 1
  %v302 = vsel %vm301, %v293, %v218
  %v303 = vsel %vm301, %v287, %v219
  %s304 = scalar_lea.vmem %s1, 24
  %v305 = vld [vmem:[%s304] sm:$0xff]
  %v306 = vpack.c.bf16 %v302, %v302
  %308 = vrot.lane.b32.xlu0 %v306, 32
  %v309 = vpop.permute.xlu0 %308
  %v311 = vsel %vm50, %v309, 0
  %313 = vmatprep.subr.bf16.mxu0 0
  %314 = vmatpush1.bf16.msra.mxu0 %v46
  %315 = vmatprep.subr.bf16.mxu0 0
  %316 = vmatpush1.bf16.msra.mxu0 %v47
  %317 = vmatprep.subr.bf16.mxu0 0
  %318 = vmatpush1.bf16.msra.mxu0 0
  %319 = vmatprep.subr.bf16.mxu0 0
  %320 = vmatpush1.bf16.msra.mxu0 0
  %321 = vmatprep.subr.bf16.mxu0 0
  %322 = vmatpush1.bf16.msra.mxu0 0
  %323 = vmatprep.subr.bf16.mxu0 0
  %324 = vmatpush1.bf16.msra.mxu0 0
  %325 = vmatprep.subr.bf16.mxu0 0
  %326 = vmatpush1.bf16.msra.mxu0 0
  %327 = vmatprep.subr.bf16.mxu0 0
  %328 = vmatpush1.bf16.msra.mxu0 0
  %329 = vmatprep.subr.bf16.mxu0 0
  %330 = vmatpush1.bf16.msra.mxu0 0
  %331 = vmatprep.subr.bf16.mxu0 0
  %332 = vmatpush1.bf16.msra.mxu0 0
  %333 = vmatprep.subr.bf16.mxu0 0
  %334 = vmatpush1.bf16.msra.mxu0 0
  %335 = vmatprep.subr.bf16.mxu0 0
  %336 = vmatpush1.bf16.msra.mxu0 0
  %337 = vmatprep.subr.bf16.mxu0 0
  %338 = vmatpush1.bf16.msra.mxu0 0
  %339 = vmatprep.subr.bf16.mxu0 0
  %340 = vmatpush1.bf16.msra.mxu0 0
  %341 = vmatprep.subr.bf16.mxu0 0
  %342 = vmatpush1.bf16.msra.mxu0 0
  %343 = vmatprep.subr.bf16.mxu0 0
  %344 = vmatpush1.bf16.msra.mxu0 0
  %345 = vmatprep.mubr.bf16.mxu0 0
  %346 = vmatmul.mubr.bf16.gmra.mrb[0].mxu0 %v311
  %v347 = vpop.f32.mrb[0].mxu0
  %v348 = vadd.f32 0.0, %v347
  %v349 = vpop.f32.mrb[0].mxu0
  %v350 = vpop.f32.mrb[0].mxu0
  %v351 = vpop.f32.mrb[0].mxu0
  %352 = vdwg.mxu0
  %v353 = vadd.f32 %v305, %v348
  %v354 = vxor.u32 %v353, 2147483648
  %v355 = vmul.f32 %v354, 1.442695
  %v356 = vpow.pop %v355
  %v357 = vadd.f32 %v356, 1.0
  %v358 = vrcp.pop %v357
  %v359 = vmul.f32 1.0, %v358
  %v360 = vtanh.pop %v353
  %v361 = vmul.f32 %v359, %v303
  %363 = vrot.lane.b32.xlu0 %v360, 64
  %v364 = vpop.permute.xlu0 %363
  %v366 = vmul.f32 %v359, %v364
  %368 = vrot.lane.b32.xlu0 %v366, 32
  %v369 = vpop.permute.xlu0 %368
  %v371 = vadd.f32 %v361, %v369
  %v372 = vtanh.pop %v371
  %374 = vrot.lane.b32.xlu0 %v372, 64
  %v375 = vpop.permute.xlu0 %374
  %v377 = vmul.f32 %v359, %v375
  %s378 = sadd.s32 %s33, 3
  %v379 = vstv %s378
  %vm380 = vcmp.lt.s32.totalorder %v379, %v32
  %v381 = vsel %vm380, 1, 0
  %382 = vset.pattern.permute.xlu0 0
  %383 = vperm.xlu0 %382, %v381
  %v384 = vpop.permute.xlu0 %383
  %vm385 = vcmp.eq.s32.totalorder %v384, 1
  %v386 = vsel %vm385, %v377, %v302
  %v387 = vsel %vm385, %v371, %v303
  %s388 = scalar_lea.vmem %s1, 32
  %v389 = vld [vmem:[%s388] sm:$0xff]
  %v390 = vpack.c.bf16 %v386, %v386
  %392 = vrot.lane.b32.xlu0 %v390, 32
  %v393 = vpop.permute.xlu0 %392
  %v395 = vsel %vm50, %v393, 0
  %397 = vmatprep.subr.bf16.mxu0 0
  %398 = vmatpush1.bf16.msra.mxu0 %v46
  %399 = vmatprep.subr.bf16.mxu0 0
  %400 = vmatpush1.bf16.msra.mxu0 %v47
  %401 = vmatprep.subr.bf16.mxu0 0
  %402 = vmatpush1.bf16.msra.mxu0 0
  %403 = vmatprep.subr.bf16.mxu0 0
  %404 = vmatpush1.bf16.msra.mxu0 0
  %405 = vmatprep.subr.bf16.mxu0 0
  %406 = vmatpush1.bf16.msra.mxu0 0
  %407 = vmatprep.subr.bf16.mxu0 0
  %408 = vmatpush1.bf16.msra.mxu0 0
  %409 = vmatprep.subr.bf16.mxu0 0
  %410 = vmatpush1.bf16.msra.mxu0 0
  %411 = vmatprep.subr.bf16.mxu0 0
  %412 = vmatpush1.bf16.msra.mxu0 0
  %413 = vmatprep.subr.bf16.mxu0 0
  %414 = vmatpush1.bf16.msra.mxu0 0
  %415 = vmatprep.subr.bf16.mxu0 0
  %416 = vmatpush1.bf16.msra.mxu0 0
  %417 = vmatprep.subr.bf16.mxu0 0
  %418 = vmatpush1.bf16.msra.mxu0 0
  %419 = vmatprep.subr.bf16.mxu0 0
  %420 = vmatpush1.bf16.msra.mxu0 0
  %421 = vmatprep.subr.bf16.mxu0 0
  %422 = vmatpush1.bf16.msra.mxu0 0
  %423 = vmatprep.subr.bf16.mxu0 0
  %424 = vmatpush1.bf16.msra.mxu0 0
  %425 = vmatprep.subr.bf16.mxu0 0
  %426 = vmatpush1.bf16.msra.mxu0 0
  %427 = vmatprep.subr.bf16.mxu0 0
  %428 = vmatpush1.bf16.msra.mxu0 0
  %429 = vmatprep.mubr.bf16.mxu0 0
  %430 = vmatmul.mubr.bf16.gmra.mrb[0].mxu0 %v395
  %v431 = vpop.f32.mrb[0].mxu0
  %v432 = vadd.f32 0.0, %v431
  %v433 = vpop.f32.mrb[0].mxu0
  %v434 = vpop.f32.mrb[0].mxu0
  %v435 = vpop.f32.mrb[0].mxu0
  %436 = vdwg.mxu0
  %v437 = vadd.f32 %v389, %v432
  %v438 = vxor.u32 %v437, 2147483648
  %v439 = vmul.f32 %v438, 1.442695
  %v440 = vpow.pop %v439
  %v441 = vadd.f32 %v440, 1.0
  %v442 = vrcp.pop %v441
  %v443 = vmul.f32 1.0, %v442
  %v444 = vtanh.pop %v437
  %v445 = vmul.f32 %v443, %v387
  %447 = vrot.lane.b32.xlu0 %v444, 64
  %v448 = vpop.permute.xlu0 %447
  %v450 = vmul.f32 %v443, %v448
  %452 = vrot.lane.b32.xlu0 %v450, 32
  %v453 = vpop.permute.xlu0 %452
  %v455 = vadd.f32 %v445, %v453
  %v456 = vtanh.pop %v455
  %458 = vrot.lane.b32.xlu0 %v456, 64
  %v459 = vpop.permute.xlu0 %458
  %v461 = vmul.f32 %v443, %v459
  %s462 = sadd.s32 %s33, 4
  %v463 = vstv %s462
  %vm464 = vcmp.lt.s32.totalorder %v463, %v32
  %v465 = vsel %vm464, 1, 0
  %466 = vset.pattern.permute.xlu0 0
  %467 = vperm.xlu0 %466, %v465
  %v468 = vpop.permute.xlu0 %467
  %vm469 = vcmp.eq.s32.totalorder %v468, 1
  %v470 = vsel %vm469, %v461, %v386
  %v471 = vsel %vm469, %v455, %v387
  %s472 = scalar_lea.vmem %s1, 40
  %v473 = vld [vmem:[%s472] sm:$0xff]
  %v474 = vpack.c.bf16 %v470, %v470
  %476 = vrot.lane.b32.xlu0 %v474, 32
  %v477 = vpop.permute.xlu0 %476
  %v479 = vsel %vm50, %v477, 0
  %481 = vmatprep.subr.bf16.mxu0 0
  %482 = vmatpush1.bf16.msra.mxu0 %v46
  %483 = vmatprep.subr.bf16.mxu0 0
  %484 = vmatpush1.bf16.msra.mxu0 %v47
  %485 = vmatprep.subr.bf16.mxu0 0
  %486 = vmatpush1.bf16.msra.mxu0 0
  %487 = vmatprep.subr.bf16.mxu0 0
  %488 = vmatpush1.bf16.msra.mxu0 0
  %489 = vmatprep.subr.bf16.mxu0 0
  %490 = vmatpush1.bf16.msra.mxu0 0
  %491 = vmatprep.subr.bf16.mxu0 0
  %492 = vmatpush1.bf16.msra.mxu0 0
  %493 = vmatprep.subr.bf16.mxu0 0
  %494 = vmatpush1.bf16.msra.mxu0 0
  %495 = vmatprep.subr.bf16.mxu0 0
  %496 = vmatpush1.bf16.msra.mxu0 0
  %497 = vmatprep.subr.bf16.mxu0 0
  %498 = vmatpush1.bf16.msra.mxu0 0
  %499 = vmatprep.subr.bf16.mxu0 0
  %500 = vmatpush1.bf16.msra.mxu0 0
  %501 = vmatprep.subr.bf16.mxu0 0
  %502 = vmatpush1.bf16.msra.mxu0 0
  %503 = vmatprep.subr.bf16.mxu0 0
  %504 = vmatpush1.bf16.msra.mxu0 0
  %505 = vmatprep.subr.bf16.mxu0 0
  %506 = vmatpush1.bf16.msra.mxu0 0
  %507 = vmatprep.subr.bf16.mxu0 0
  %508 = vmatpush1.bf16.msra.mxu0 0
  %509 = vmatprep.subr.bf16.mxu0 0
  %510 = vmatpush1.bf16.msra.mxu0 0
  %511 = vmatprep.subr.bf16.mxu0 0
  %512 = vmatpush1.bf16.msra.mxu0 0
  %513 = vmatprep.mubr.bf16.mxu0 0
  %514 = vmatmul.mubr.bf16.gmra.mrb[0].mxu0 %v479
  %v515 = vpop.f32.mrb[0].mxu0
  %v516 = vadd.f32 0.0, %v515
  %v517 = vpop.f32.mrb[0].mxu0
  %v518 = vpop.f32.mrb[0].mxu0
  %v519 = vpop.f32.mrb[0].mxu0
  %520 = vdwg.mxu0
  %v521 = vadd.f32 %v473, %v516
  %v522 = vxor.u32 %v521, 2147483648
  %v523 = vmul.f32 %v522, 1.442695
  %v524 = vpow.pop %v523
  %v525 = vadd.f32 %v524, 1.0
  %v526 = vrcp.pop %v525
  %v527 = vmul.f32 1.0, %v526
  %v528 = vtanh.pop %v521
  %v529 = vmul.f32 %v527, %v471
  %531 = vrot.lane.b32.xlu0 %v528, 64
  %v532 = vpop.permute.xlu0 %531
  %v534 = vmul.f32 %v527, %v532
  %536 = vrot.lane.b32.xlu0 %v534, 32
  %v537 = vpop.permute.xlu0 %536
  %v539 = vadd.f32 %v529, %v537
  %v540 = vtanh.pop %v539
  %542 = vrot.lane.b32.xlu0 %v540, 64
  %v543 = vpop.permute.xlu0 %542
  %v545 = vmul.f32 %v527, %v543
  %s546 = sadd.s32 %s33, 5
  %v547 = vstv %s546
  %vm548 = vcmp.lt.s32.totalorder %v547, %v32
  %v549 = vsel %vm548, 1, 0
  %550 = vset.pattern.permute.xlu0 0
  %551 = vperm.xlu0 %550, %v549
  %v552 = vpop.permute.xlu0 %551
  %vm553 = vcmp.eq.s32.totalorder %v552, 1
  %v554 = vsel %vm553, %v545, %v470
  %v555 = vsel %vm553, %v539, %v471
  %s556 = scalar_lea.vmem %s1, 48
  %v557 = vld [vmem:[%s556] sm:$0xff]
  %v558 = vpack.c.bf16 %v554, %v554
  %560 = vrot.lane.b32.xlu0 %v558, 32
  %v561 = vpop.permute.xlu0 %560
  %v563 = vsel %vm50, %v561, 0
  %565 = vmatprep.subr.bf16.mxu0 0
  %566 = vmatpush1.bf16.msra.mxu0 %v46
  %567 = vmatprep.subr.bf16.mxu0 0
  %568 = vmatpush1.bf16.msra.mxu0 %v47
  %569 = vmatprep.subr.bf16.mxu0 0
  %570 = vmatpush1.bf16.msra.mxu0 0
  %571 = vmatprep.subr.bf16.mxu0 0
  %572 = vmatpush1.bf16.msra.mxu0 0
  %573 = vmatprep.subr.bf16.mxu0 0
  %574 = vmatpush1.bf16.msra.mxu0 0
  %575 = vmatprep.subr.bf16.mxu0 0
  %576 = vmatpush1.bf16.msra.mxu0 0
  %577 = vmatprep.subr.bf16.mxu0 0
  %578 = vmatpush1.bf16.msra.mxu0 0
  %579 = vmatprep.subr.bf16.mxu0 0
  %580 = vmatpush1.bf16.msra.mxu0 0
  %581 = vmatprep.subr.bf16.mxu0 0
  %582 = vmatpush1.bf16.msra.mxu0 0
  %583 = vmatprep.subr.bf16.mxu0 0
  %584 = vmatpush1.bf16.msra.mxu0 0
  %585 = vmatprep.subr.bf16.mxu0 0
  %586 = vmatpush1.bf16.msra.mxu0 0
  %587 = vmatprep.subr.bf16.mxu0 0
  %588 = vmatpush1.bf16.msra.mxu0 0
  %589 = vmatprep.subr.bf16.mxu0 0
  %590 = vmatpush1.bf16.msra.mxu0 0
  %591 = vmatprep.subr.bf16.mxu0 0
  %592 = vmatpush1.bf16.msra.mxu0 0
  %593 = vmatprep.subr.bf16.mxu0 0
  %594 = vmatpush1.bf16.msra.mxu0 0
  %595 = vmatprep.subr.bf16.mxu0 0
  %596 = vmatpush1.bf16.msra.mxu0 0
  %597 = vmatprep.mubr.bf16.mxu0 0
  %598 = vmatmul.mubr.bf16.gmra.mrb[0].mxu0 %v563
  %v599 = vpop.f32.mrb[0].mxu0
  %v600 = vadd.f32 0.0, %v599
  %v601 = vpop.f32.mrb[0].mxu0
  %v602 = vpop.f32.mrb[0].mxu0
  %v603 = vpop.f32.mrb[0].mxu0
  %604 = vdwg.mxu0
  %v605 = vadd.f32 %v557, %v600
  %v606 = vxor.u32 %v605, 2147483648
  %v607 = vmul.f32 %v606, 1.442695
  %v608 = vpow.pop %v607
  %v609 = vadd.f32 %v608, 1.0
  %v610 = vrcp.pop %v609
  %v611 = vmul.f32 1.0, %v610
  %v612 = vtanh.pop %v605
  %v613 = vmul.f32 %v611, %v555
  %615 = vrot.lane.b32.xlu0 %v612, 64
  %v616 = vpop.permute.xlu0 %615
  %v618 = vmul.f32 %v611, %v616
  %620 = vrot.lane.b32.xlu0 %v618, 32
  %v621 = vpop.permute.xlu0 %620
  %v623 = vadd.f32 %v613, %v621
  %v624 = vtanh.pop %v623
  %626 = vrot.lane.b32.xlu0 %v624, 64
  %v627 = vpop.permute.xlu0 %626
  %v629 = vmul.f32 %v611, %v627
  %s630 = sadd.s32 %s33, 6
  %v631 = vstv %s630
  %vm632 = vcmp.lt.s32.totalorder %v631, %v32
  %v633 = vsel %vm632, 1, 0
  %634 = vset.pattern.permute.xlu0 0
  %635 = vperm.xlu0 %634, %v633
  %v636 = vpop.permute.xlu0 %635
  %vm637 = vcmp.eq.s32.totalorder %v636, 1
  %v638 = vsel %vm637, %v629, %v554
  %v639 = vsel %vm637, %v623, %v555
  %s640 = scalar_lea.vmem %s1, 56
  %v641 = vld [vmem:[%s640] sm:$0xff]
  %v642 = vpack.c.bf16 %v638, %v638
  %644 = vrot.lane.b32.xlu0 %v642, 32
  %v645 = vpop.permute.xlu0 %644
  %v647 = vsel %vm50, %v645, 0
  %649 = vmatprep.subr.bf16.mxu0 0
  %650 = vmatpush1.bf16.msra.mxu0 %v46
  %651 = vmatprep.subr.bf16.mxu0 0
  %652 = vmatpush1.bf16.msra.mxu0 %v47
  %653 = vmatprep.subr.bf16.mxu0 0
  %654 = vmatpush1.bf16.msra.mxu0 0
  %655 = vmatprep.subr.bf16.mxu0 0
  %656 = vmatpush1.bf16.msra.mxu0 0
  %657 = vmatprep.subr.bf16.mxu0 0
  %658 = vmatpush1.bf16.msra.mxu0 0
  %659 = vmatprep.subr.bf16.mxu0 0
  %660 = vmatpush1.bf16.msra.mxu0 0
  %661 = vmatprep.subr.bf16.mxu0 0
  %662 = vmatpush1.bf16.msra.mxu0 0
  %663 = vmatprep.subr.bf16.mxu0 0
  %664 = vmatpush1.bf16.msra.mxu0 0
  %665 = vmatprep.subr.bf16.mxu0 0
  %666 = vmatpush1.bf16.msra.mxu0 0
  %667 = vmatprep.subr.bf16.mxu0 0
  %668 = vmatpush1.bf16.msra.mxu0 0
  %669 = vmatprep.subr.bf16.mxu0 0
  %670 = vmatpush1.bf16.msra.mxu0 0
  %671 = vmatprep.subr.bf16.mxu0 0
  %672 = vmatpush1.bf16.msra.mxu0 0
  %673 = vmatprep.subr.bf16.mxu0 0
  %674 = vmatpush1.bf16.msra.mxu0 0
  %675 = vmatprep.subr.bf16.mxu0 0
  %676 = vmatpush1.bf16.msra.mxu0 0
  %677 = vmatprep.subr.bf16.mxu0 0
  %678 = vmatpush1.bf16.msra.mxu0 0
  %679 = vmatprep.subr.bf16.mxu0 0
  %680 = vmatpush1.bf16.msra.mxu0 0
  %681 = vmatprep.mubr.bf16.mxu0 0
  %682 = vmatmul.mubr.bf16.gmra.mrb[0].mxu0 %v647
  %v683 = vpop.f32.mrb[0].mxu0
  %v684 = vadd.f32 0.0, %v683
  %v685 = vpop.f32.mrb[0].mxu0
  %v686 = vpop.f32.mrb[0].mxu0
  %v687 = vpop.f32.mrb[0].mxu0
  %688 = vdwg.mxu0
  %v689 = vadd.f32 %v641, %v684
  %v690 = vxor.u32 %v689, 2147483648
  %v691 = vmul.f32 %v690, 1.442695
  %v692 = vpow.pop %v691
  %v693 = vadd.f32 %v692, 1.0
  %v694 = vrcp.pop %v693
  %v695 = vmul.f32 1.0, %v694
  %v696 = vtanh.pop %v689
  %v697 = vmul.f32 %v695, %v639
  %699 = vrot.lane.b32.xlu0 %v696, 64
  %v700 = vpop.permute.xlu0 %699
  %v702 = vmul.f32 %v695, %v700
  %704 = vrot.lane.b32.xlu0 %v702, 32
  %v705 = vpop.permute.xlu0 %704
  %v707 = vadd.f32 %v697, %v705
  %v708 = vtanh.pop %v707
  %710 = vrot.lane.b32.xlu0 %v708, 64
  %v711 = vpop.permute.xlu0 %710
  %v713 = vmul.f32 %v695, %v711
  %s714 = sadd.s32 %s33, 7
  %v715 = vstv %s714
  %vm716 = vcmp.lt.s32.totalorder %v715, %v32
  %v717 = vsel %vm716, 1, 0
  %718 = vset.pattern.permute.xlu0 0
  %719 = vperm.xlu0 %718, %v717
  %v720 = vpop.permute.xlu0 %719
  %vm721 = vcmp.eq.s32.totalorder %v720, 1
  %v722 = vsel %vm721, %v713, %v638
  %v723 = vsel %vm721, %v707, %v639
  %s724 = scalar_lea.vmem %s1, 64
  %v725 = vld [vmem:[%s724] sm:$0xff]
  %v726 = vpack.c.bf16 %v722, %v722
  %728 = vrot.lane.b32.xlu0 %v726, 32
  %v729 = vpop.permute.xlu0 %728
  %v731 = vsel %vm50, %v729, 0
  %733 = vmatprep.subr.bf16.mxu0 0
  %734 = vmatpush1.bf16.msra.mxu0 %v46
  %735 = vmatprep.subr.bf16.mxu0 0
  %736 = vmatpush1.bf16.msra.mxu0 %v47
  %737 = vmatprep.subr.bf16.mxu0 0
  %738 = vmatpush1.bf16.msra.mxu0 0
  %739 = vmatprep.subr.bf16.mxu0 0
  %740 = vmatpush1.bf16.msra.mxu0 0
  %741 = vmatprep.subr.bf16.mxu0 0
  %742 = vmatpush1.bf16.msra.mxu0 0
  %743 = vmatprep.subr.bf16.mxu0 0
  %744 = vmatpush1.bf16.msra.mxu0 0
  %745 = vmatprep.subr.bf16.mxu0 0
  %746 = vmatpush1.bf16.msra.mxu0 0
  %747 = vmatprep.subr.bf16.mxu0 0
  %748 = vmatpush1.bf16.msra.mxu0 0
  %749 = vmatprep.subr.bf16.mxu0 0
  %750 = vmatpush1.bf16.msra.mxu0 0
  %751 = vmatprep.subr.bf16.mxu0 0
  %752 = vmatpush1.bf16.msra.mxu0 0
  %753 = vmatprep.subr.bf16.mxu0 0
  %754 = vmatpush1.bf16.msra.mxu0 0
  %755 = vmatprep.subr.bf16.mxu0 0
  %756 = vmatpush1.bf16.msra.mxu0 0
  %757 = vmatprep.subr.bf16.mxu0 0
  %758 = vmatpush1.bf16.msra.mxu0 0
  %759 = vmatprep.subr.bf16.mxu0 0
  %760 = vmatpush1.bf16.msra.mxu0 0
  %761 = vmatprep.subr.bf16.mxu0 0
  %762 = vmatpush1.bf16.msra.mxu0 0
  %763 = vmatprep.subr.bf16.mxu0 0
  %764 = vmatpush1.bf16.msra.mxu0 0
  %765 = vmatprep.mubr.bf16.mxu0 0
  %766 = vmatmul.mubr.bf16.gmra.mrb[0].mxu0 %v731
  %v767 = vpop.f32.mrb[0].mxu0
  %v768 = vadd.f32 0.0, %v767
  %v769 = vpop.f32.mrb[0].mxu0
  %v770 = vpop.f32.mrb[0].mxu0
  %v771 = vpop.f32.mrb[0].mxu0
  %772 = vdwg.mxu0
  %v773 = vadd.f32 %v725, %v768
  %v774 = vxor.u32 %v773, 2147483648
  %v775 = vmul.f32 %v774, 1.442695
  %v776 = vpow.pop %v775
  %v777 = vadd.f32 %v776, 1.0
  %v778 = vrcp.pop %v777
  %v779 = vmul.f32 1.0, %v778
  %v780 = vtanh.pop %v773
  %v781 = vmul.f32 %v779, %v723
  %783 = vrot.lane.b32.xlu0 %v780, 64
  %v784 = vpop.permute.xlu0 %783
  %v786 = vmul.f32 %v779, %v784
  %788 = vrot.lane.b32.xlu0 %v786, 32
  %v789 = vpop.permute.xlu0 %788
  %v791 = vadd.f32 %v781, %v789
  %v792 = vtanh.pop %v791
  %794 = vrot.lane.b32.xlu0 %v792, 64
  %v795 = vpop.permute.xlu0 %794
  %v797 = vmul.f32 %v779, %v795
  %s798 = sadd.s32 %s33, 8
  %v799 = vstv %s798
  %vm800 = vcmp.lt.s32.totalorder %v799, %v32
  %v801 = vsel %vm800, 1, 0
  %802 = vset.pattern.permute.xlu0 0
  %803 = vperm.xlu0 %802, %v801
  %v804 = vpop.permute.xlu0 %803
  %vm805 = vcmp.eq.s32.totalorder %v804, 1
  %v806 = vsel %vm805, %v797, %v722
  %v807 = vsel %vm805, %v791, %v723
  %s808 = scalar_lea.vmem %s1, 72
  %v809 = vld [vmem:[%s808] sm:$0xff]
  %v810 = vpack.c.bf16 %v806, %v806
  %812 = vrot.lane.b32.xlu0 %v810, 32
  %v813 = vpop.permute.xlu0 %812
  %v815 = vsel %vm50, %v813, 0
  %817 = vmatprep.subr.bf16.mxu0 0
  %818 = vmatpush1.bf16.msra.mxu0 %v46
  %819 = vmatprep.subr.bf16.mxu0 0
  %820 = vmatpush1.bf16.msra.mxu0 %v47
  %821 = vmatprep.subr.bf16.mxu0 0
  %822 = vmatpush1.bf16.msra.mxu0 0
  %823 = vmatprep.subr.bf16.mxu0 0
  %824 = vmatpush1.bf16.msra.mxu0 0
  %825 = vmatprep.subr.bf16.mxu0 0
  %826 = vmatpush1.bf16.msra.mxu0 0
  %827 = vmatprep.subr.bf16.mxu0 0
  %828 = vmatpush1.bf16.msra.mxu0 0
  %829 = vmatprep.subr.bf16.mxu0 0
  %830 = vmatpush1.bf16.msra.mxu0 0
  %831 = vmatprep.subr.bf16.mxu0 0
  %832 = vmatpush1.bf16.msra.mxu0 0
  %833 = vmatprep.subr.bf16.mxu0 0
  %834 = vmatpush1.bf16.msra.mxu0 0
  %835 = vmatprep.subr.bf16.mxu0 0
  %836 = vmatpush1.bf16.msra.mxu0 0
  %837 = vmatprep.subr.bf16.mxu0 0
  %838 = vmatpush1.bf16.msra.mxu0 0
  %839 = vmatprep.subr.bf16.mxu0 0
  %840 = vmatpush1.bf16.msra.mxu0 0
  %841 = vmatprep.subr.bf16.mxu0 0
  %842 = vmatpush1.bf16.msra.mxu0 0
  %843 = vmatprep.subr.bf16.mxu0 0
  %844 = vmatpush1.bf16.msra.mxu0 0
  %845 = vmatprep.subr.bf16.mxu0 0
  %846 = vmatpush1.bf16.msra.mxu0 0
  %847 = vmatprep.subr.bf16.mxu0 0
  %848 = vmatpush1.bf16.msra.mxu0 0
  %849 = vmatprep.mubr.bf16.mxu0 0
  %850 = vmatmul.mubr.bf16.gmra.mrb[0].mxu0 %v815
  %v851 = vpop.f32.mrb[0].mxu0
  %v852 = vadd.f32 0.0, %v851
  %v853 = vpop.f32.mrb[0].mxu0
  %v854 = vpop.f32.mrb[0].mxu0
  %v855 = vpop.f32.mrb[0].mxu0
  %856 = vdwg.mxu0
  %v857 = vadd.f32 %v809, %v852
  %v858 = vxor.u32 %v857, 2147483648
  %v859 = vmul.f32 %v858, 1.442695
  %v860 = vpow.pop %v859
  %v861 = vadd.f32 %v860, 1.0
  %v862 = vrcp.pop %v861
  %v863 = vmul.f32 1.0, %v862
  %v864 = vtanh.pop %v857
  %v865 = vmul.f32 %v863, %v807
  %867 = vrot.lane.b32.xlu0 %v864, 64
  %v868 = vpop.permute.xlu0 %867
  %v870 = vmul.f32 %v863, %v868
  %872 = vrot.lane.b32.xlu0 %v870, 32
  %v873 = vpop.permute.xlu0 %872
  %v875 = vadd.f32 %v865, %v873
  %v876 = vtanh.pop %v875
  %878 = vrot.lane.b32.xlu0 %v876, 64
  %v879 = vpop.permute.xlu0 %878
  %v881 = vmul.f32 %v863, %v879
  %s882 = sadd.s32 %s33, 9
  %v883 = vstv %s882
  %vm884 = vcmp.lt.s32.totalorder %v883, %v32
  %v885 = vsel %vm884, 1, 0
  %886 = vset.pattern.permute.xlu0 0
  %887 = vperm.xlu0 %886, %v885
  %v888 = vpop.permute.xlu0 %887
  %vm889 = vcmp.eq.s32.totalorder %v888, 1
  %v890 = vsel %vm889, %v881, %v806
  %v891 = vsel %vm889, %v875, %v807
  %s892 = scalar_lea.vmem %s1, 80
  %v893 = vld [vmem:[%s892] sm:$0xff]
  %v894 = vpack.c.bf16 %v890, %v890
  %896 = vrot.lane.b32.xlu0 %v894, 32
  %v897 = vpop.permute.xlu0 %896
  %v899 = vsel %vm50, %v897, 0
  %901 = vmatprep.subr.bf16.mxu0 0
  %902 = vmatpush1.bf16.msra.mxu0 %v46
  %903 = vmatprep.subr.bf16.mxu0 0
  %904 = vmatpush1.bf16.msra.mxu0 %v47
  %905 = vmatprep.subr.bf16.mxu0 0
  %906 = vmatpush1.bf16.msra.mxu0 0
  %907 = vmatprep.subr.bf16.mxu0 0
  %908 = vmatpush1.bf16.msra.mxu0 0
  %909 = vmatprep.subr.bf16.mxu0 0
  %910 = vmatpush1.bf16.msra.mxu0 0
  %911 = vmatprep.subr.bf16.mxu0 0
  %912 = vmatpush1.bf16.msra.mxu0 0
  %913 = vmatprep.subr.bf16.mxu0 0
  %914 = vmatpush1.bf16.msra.mxu0 0
  %915 = vmatprep.subr.bf16.mxu0 0
  %916 = vmatpush1.bf16.msra.mxu0 0
  %917 = vmatprep.subr.bf16.mxu0 0
  %918 = vmatpush1.bf16.msra.mxu0 0
  %919 = vmatprep.subr.bf16.mxu0 0
  %920 = vmatpush1.bf16.msra.mxu0 0
  %921 = vmatprep.subr.bf16.mxu0 0
  %922 = vmatpush1.bf16.msra.mxu0 0
  %923 = vmatprep.subr.bf16.mxu0 0
  %924 = vmatpush1.bf16.msra.mxu0 0
  %925 = vmatprep.subr.bf16.mxu0 0
  %926 = vmatpush1.bf16.msra.mxu0 0
  %927 = vmatprep.subr.bf16.mxu0 0
  %928 = vmatpush1.bf16.msra.mxu0 0
  %929 = vmatprep.subr.bf16.mxu0 0
  %930 = vmatpush1.bf16.msra.mxu0 0
  %931 = vmatprep.subr.bf16.mxu0 0
  %932 = vmatpush1.bf16.msra.mxu0 0
  %933 = vmatprep.mubr.bf16.mxu0 0
  %934 = vmatmul.mubr.bf16.gmra.mrb[0].mxu0 %v899
  %v935 = vpop.f32.mrb[0].mxu0
  %v936 = vadd.f32 0.0, %v935
  %v937 = vpop.f32.mrb[0].mxu0
  %v938 = vpop.f32.mrb[0].mxu0
  %v939 = vpop.f32.mrb[0].mxu0
  %940 = vdwg.mxu0
  %v941 = vadd.f32 %v893, %v936
  %v942 = vxor.u32 %v941, 2147483648
  %v943 = vmul.f32 %v942, 1.442695
  %v944 = vpow.pop %v943
  %v945 = vadd.f32 %v944, 1.0
  %v946 = vrcp.pop %v945
  %v947 = vmul.f32 1.0, %v946
  %v948 = vtanh.pop %v941
  %v949 = vmul.f32 %v947, %v891
  %951 = vrot.lane.b32.xlu0 %v948, 64
  %v952 = vpop.permute.xlu0 %951
  %v954 = vmul.f32 %v947, %v952
  %956 = vrot.lane.b32.xlu0 %v954, 32
  %v957 = vpop.permute.xlu0 %956
  %v959 = vadd.f32 %v949, %v957
  %v960 = vtanh.pop %v959
  %962 = vrot.lane.b32.xlu0 %v960, 64
  %v963 = vpop.permute.xlu0 %962
  %v965 = vmul.f32 %v947, %v963
  %s966 = sadd.s32 %s33, 10
  %v967 = vstv %s966
  %vm968 = vcmp.lt.s32.totalorder %v967, %v32
  %v969 = vsel %vm968, 1, 0
  %970 = vset.pattern.permute.xlu0 0
  %971 = vperm.xlu0 %970, %v969
  %v972 = vpop.permute.xlu0 %971
  %vm973 = vcmp.eq.s32.totalorder %v972, 1
  %v974 = vsel %vm973, %v965, %v890
  %v975 = vsel %vm973, %v959, %v891
  %s976 = scalar_lea.vmem %s1, 88
  %v977 = vld [vmem:[%s976] sm:$0xff]
  %v978 = vpack.c.bf16 %v974, %v974
  %980 = vrot.lane.b32.xlu0 %v978, 32
  %v981 = vpop.permute.xlu0 %980
  %v983 = vsel %vm50, %v981, 0
  %985 = vmatprep.subr.bf16.mxu0 0
  %986 = vmatpush1.bf16.msra.mxu0 %v46
  %987 = vmatprep.subr.bf16.mxu0 0
  %988 = vmatpush1.bf16.msra.mxu0 %v47
  %989 = vmatprep.subr.bf16.mxu0 0
  %990 = vmatpush1.bf16.msra.mxu0 0
  %991 = vmatprep.subr.bf16.mxu0 0
  %992 = vmatpush1.bf16.msra.mxu0 0
  %993 = vmatprep.subr.bf16.mxu0 0
  %994 = vmatpush1.bf16.msra.mxu0 0
  %995 = vmatprep.subr.bf16.mxu0 0
  %996 = vmatpush1.bf16.msra.mxu0 0
  %997 = vmatprep.subr.bf16.mxu0 0
  %998 = vmatpush1.bf16.msra.mxu0 0
  %999 = vmatprep.subr.bf16.mxu0 0
  %1000 = vmatpush1.bf16.msra.mxu0 0
  %1001 = vmatprep.subr.bf16.mxu0 0
  %1002 = vmatpush1.bf16.msra.mxu0 0
  %1003 = vmatprep.subr.bf16.mxu0 0
  %1004 = vmatpush1.bf16.msra.mxu0 0
  %1005 = vmatprep.subr.bf16.mxu0 0
  %1006 = vmatpush1.bf16.msra.mxu0 0
  %1007 = vmatprep.subr.bf16.mxu0 0
  %1008 = vmatpush1.bf16.msra.mxu0 0
  %1009 = vmatprep.subr.bf16.mxu0 0
  %1010 = vmatpush1.bf16.msra.mxu0 0
  %1011 = vmatprep.subr.bf16.mxu0 0
  %1012 = vmatpush1.bf16.msra.mxu0 0
  %1013 = vmatprep.subr.bf16.mxu0 0
  %1014 = vmatpush1.bf16.msra.mxu0 0
  %1015 = vmatprep.subr.bf16.mxu0 0
  %1016 = vmatpush1.bf16.msra.mxu0 0
  %1017 = vmatprep.mubr.bf16.mxu0 0
  %1018 = vmatmul.mubr.bf16.gmra.mrb[0].mxu0 %v983
  %v1019 = vpop.f32.mrb[0].mxu0
  %v1020 = vadd.f32 0.0, %v1019
  %v1021 = vpop.f32.mrb[0].mxu0
  %v1022 = vpop.f32.mrb[0].mxu0
  %v1023 = vpop.f32.mrb[0].mxu0
  %1024 = vdwg.mxu0
  %v1025 = vadd.f32 %v977, %v1020
  %v1026 = vxor.u32 %v1025, 2147483648
  %v1027 = vmul.f32 %v1026, 1.442695
  %v1028 = vpow.pop %v1027
  %v1029 = vadd.f32 %v1028, 1.0
  %v1030 = vrcp.pop %v1029
  %v1031 = vmul.f32 1.0, %v1030
  %v1032 = vtanh.pop %v1025
  %v1033 = vmul.f32 %v1031, %v975
  %1035 = vrot.lane.b32.xlu0 %v1032, 64
  %v1036 = vpop.permute.xlu0 %1035
  %v1038 = vmul.f32 %v1031, %v1036
  %1040 = vrot.lane.b32.xlu0 %v1038, 32
  %v1041 = vpop.permute.xlu0 %1040
  %v1043 = vadd.f32 %v1033, %v1041
  %v1044 = vtanh.pop %v1043
  %1046 = vrot.lane.b32.xlu0 %v1044, 64
  %v1047 = vpop.permute.xlu0 %1046
  %v1049 = vmul.f32 %v1031, %v1047
  %s1050 = sadd.s32 %s33, 11
  %v1051 = vstv %s1050
  %vm1052 = vcmp.lt.s32.totalorder %v1051, %v32
  %v1053 = vsel %vm1052, 1, 0
  %1054 = vset.pattern.permute.xlu0 0
  %1055 = vperm.xlu0 %1054, %v1053
  %v1056 = vpop.permute.xlu0 %1055
  %vm1057 = vcmp.eq.s32.totalorder %v1056, 1
  %v1058 = vsel %vm1057, %v1049, %v974
  %v1059 = vsel %vm1057, %v1043, %v975
  %s1060 = scalar_lea.vmem %s1, 96
  %v1061 = vld [vmem:[%s1060] sm:$0xff]
  %v1062 = vpack.c.bf16 %v1058, %v1058
  %1064 = vrot.lane.b32.xlu0 %v1062, 32
  %v1065 = vpop.permute.xlu0 %1064
  %v1067 = vsel %vm50, %v1065, 0
  %1069 = vmatprep.subr.bf16.mxu0 0
  %1070 = vmatpush1.bf16.msra.mxu0 %v46
  %1071 = vmatprep.subr.bf16.mxu0 0
  %1072 = vmatpush1.bf16.msra.mxu0 %v47
  %1073 = vmatprep.subr.bf16.mxu0 0
  %1074 = vmatpush1.bf16.msra.mxu0 0
  %1075 = vmatprep.subr.bf16.mxu0 0
  %1076 = vmatpush1.bf16.msra.mxu0 0
  %1077 = vmatprep.subr.bf16.mxu0 0
  %1078 = vmatpush1.bf16.msra.mxu0 0
  %1079 = vmatprep.subr.bf16.mxu0 0
  %1080 = vmatpush1.bf16.msra.mxu0 0
  %1081 = vmatprep.subr.bf16.mxu0 0
  %1082 = vmatpush1.bf16.msra.mxu0 0
  %1083 = vmatprep.subr.bf16.mxu0 0
  %1084 = vmatpush1.bf16.msra.mxu0 0
  %1085 = vmatprep.subr.bf16.mxu0 0
  %1086 = vmatpush1.bf16.msra.mxu0 0
  %1087 = vmatprep.subr.bf16.mxu0 0
  %1088 = vmatpush1.bf16.msra.mxu0 0
  %1089 = vmatprep.subr.bf16.mxu0 0
  %1090 = vmatpush1.bf16.msra.mxu0 0
  %1091 = vmatprep.subr.bf16.mxu0 0
  %1092 = vmatpush1.bf16.msra.mxu0 0
  %1093 = vmatprep.subr.bf16.mxu0 0
  %1094 = vmatpush1.bf16.msra.mxu0 0
  %1095 = vmatprep.subr.bf16.mxu0 0
  %1096 = vmatpush1.bf16.msra.mxu0 0
  %1097 = vmatprep.subr.bf16.mxu0 0
  %1098 = vmatpush1.bf16.msra.mxu0 0
  %1099 = vmatprep.subr.bf16.mxu0 0
  %1100 = vmatpush1.bf16.msra.mxu0 0
  %1101 = vmatprep.mubr.bf16.mxu0 0
  %1102 = vmatmul.mubr.bf16.gmra.mrb[0].mxu0 %v1067
  %v1103 = vpop.f32.mrb[0].mxu0
  %v1104 = vadd.f32 0.0, %v1103
  %v1105 = vpop.f32.mrb[0].mxu0
  %v1106 = vpop.f32.mrb[0].mxu0
  %v1107 = vpop.f32.mrb[0].mxu0
  %1108 = vdwg.mxu0
  %v1109 = vadd.f32 %v1061, %v1104
  %v1110 = vxor.u32 %v1109, 2147483648
  %v1111 = vmul.f32 %v1110, 1.442695
  %v1112 = vpow.pop %v1111
  %v1113 = vadd.f32 %v1112, 1.0
  %v1114 = vrcp.pop %v1113
  %v1115 = vmul.f32 1.0, %v1114
  %v1116 = vtanh.pop %v1109
  %v1117 = vmul.f32 %v1115, %v1059
  %1119 = vrot.lane.b32.xlu0 %v1116, 64
  %v1120 = vpop.permute.xlu0 %1119
  %v1122 = vmul.f32 %v1115, %v1120
  %1124 = vrot.lane.b32.xlu0 %v1122, 32
  %v1125 = vpop.permute.xlu0 %1124
  %v1127 = vadd.f32 %v1117, %v1125
  %v1128 = vtanh.pop %v1127
  %1130 = vrot.lane.b32.xlu0 %v1128, 64
  %v1131 = vpop.permute.xlu0 %1130
  %v1133 = vmul.f32 %v1115, %v1131
  %s1134 = sadd.s32 %s33, 12
  %v1135 = vstv %s1134
  %vm1136 = vcmp.lt.s32.totalorder %v1135, %v32
  %v1137 = vsel %vm1136, 1, 0
  %1138 = vset.pattern.permute.xlu0 0
  %1139 = vperm.xlu0 %1138, %v1137
  %v1140 = vpop.permute.xlu0 %1139
  %vm1141 = vcmp.eq.s32.totalorder %v1140, 1
  %v1142 = vsel %vm1141, %v1133, %v1058
  %v1143 = vsel %vm1141, %v1127, %v1059
  %s1144 = scalar_lea.vmem %s1, 104
  %v1145 = vld [vmem:[%s1144] sm:$0xff]
  %v1146 = vpack.c.bf16 %v1142, %v1142
  %1148 = vrot.lane.b32.xlu0 %v1146, 32
  %v1149 = vpop.permute.xlu0 %1148
  %v1151 = vsel %vm50, %v1149, 0
  %1153 = vmatprep.subr.bf16.mxu0 0
  %1154 = vmatpush1.bf16.msra.mxu0 %v46
  %1155 = vmatprep.subr.bf16.mxu0 0
  %1156 = vmatpush1.bf16.msra.mxu0 %v47
  %1157 = vmatprep.subr.bf16.mxu0 0
  %1158 = vmatpush1.bf16.msra.mxu0 0
  %1159 = vmatprep.subr.bf16.mxu0 0
  %1160 = vmatpush1.bf16.msra.mxu0 0
  %1161 = vmatprep.subr.bf16.mxu0 0
  %1162 = vmatpush1.bf16.msra.mxu0 0
  %1163 = vmatprep.subr.bf16.mxu0 0
  %1164 = vmatpush1.bf16.msra.mxu0 0
  %1165 = vmatprep.subr.bf16.mxu0 0
  %1166 = vmatpush1.bf16.msra.mxu0 0
  %1167 = vmatprep.subr.bf16.mxu0 0
  %1168 = vmatpush1.bf16.msra.mxu0 0
  %1169 = vmatprep.subr.bf16.mxu0 0
  %1170 = vmatpush1.bf16.msra.mxu0 0
  %1171 = vmatprep.subr.bf16.mxu0 0
  %1172 = vmatpush1.bf16.msra.mxu0 0
  %1173 = vmatprep.subr.bf16.mxu0 0
  %1174 = vmatpush1.bf16.msra.mxu0 0
  %1175 = vmatprep.subr.bf16.mxu0 0
  %1176 = vmatpush1.bf16.msra.mxu0 0
  %1177 = vmatprep.subr.bf16.mxu0 0
  %1178 = vmatpush1.bf16.msra.mxu0 0
  %1179 = vmatprep.subr.bf16.mxu0 0
  %1180 = vmatpush1.bf16.msra.mxu0 0
  %1181 = vmatprep.subr.bf16.mxu0 0
  %1182 = vmatpush1.bf16.msra.mxu0 0
  %1183 = vmatprep.subr.bf16.mxu0 0
  %1184 = vmatpush1.bf16.msra.mxu0 0
  %1185 = vmatprep.mubr.bf16.mxu0 0
  %1186 = vmatmul.mubr.bf16.gmra.mrb[0].mxu0 %v1151
  %v1187 = vpop.f32.mrb[0].mxu0
  %v1188 = vadd.f32 0.0, %v1187
  %v1189 = vpop.f32.mrb[0].mxu0
  %v1190 = vpop.f32.mrb[0].mxu0
  %v1191 = vpop.f32.mrb[0].mxu0
  %1192 = vdwg.mxu0
  %v1193 = vadd.f32 %v1145, %v1188
  %v1194 = vxor.u32 %v1193, 2147483648
  %v1195 = vmul.f32 %v1194, 1.442695
  %v1196 = vpow.pop %v1195
  %v1197 = vadd.f32 %v1196, 1.0
  %v1198 = vrcp.pop %v1197
  %v1199 = vmul.f32 1.0, %v1198
  %v1200 = vtanh.pop %v1193
  %v1201 = vmul.f32 %v1199, %v1143
  %1203 = vrot.lane.b32.xlu0 %v1200, 64
  %v1204 = vpop.permute.xlu0 %1203
  %v1206 = vmul.f32 %v1199, %v1204
  %1208 = vrot.lane.b32.xlu0 %v1206, 32
  %v1209 = vpop.permute.xlu0 %1208
  %v1211 = vadd.f32 %v1201, %v1209
  %v1212 = vtanh.pop %v1211
  %1214 = vrot.lane.b32.xlu0 %v1212, 64
  %v1215 = vpop.permute.xlu0 %1214
  %v1217 = vmul.f32 %v1199, %v1215
  %s1218 = sadd.s32 %s33, 13
  %v1219 = vstv %s1218
  %vm1220 = vcmp.lt.s32.totalorder %v1219, %v32
  %v1221 = vsel %vm1220, 1, 0
  %1222 = vset.pattern.permute.xlu0 0
  %1223 = vperm.xlu0 %1222, %v1221
  %v1224 = vpop.permute.xlu0 %1223
  %vm1225 = vcmp.eq.s32.totalorder %v1224, 1
  %v1226 = vsel %vm1225, %v1217, %v1142
  %v1227 = vsel %vm1225, %v1211, %v1143
  %s1228 = scalar_lea.vmem %s1, 112
  %v1229 = vld [vmem:[%s1228] sm:$0xff]
  %v1230 = vpack.c.bf16 %v1226, %v1226
  %1232 = vrot.lane.b32.xlu0 %v1230, 32
  %v1233 = vpop.permute.xlu0 %1232
  %v1235 = vsel %vm50, %v1233, 0
  %1237 = vmatprep.subr.bf16.mxu0 0
  %1238 = vmatpush1.bf16.msra.mxu0 %v46
  %1239 = vmatprep.subr.bf16.mxu0 0
  %1240 = vmatpush1.bf16.msra.mxu0 %v47
  %1241 = vmatprep.subr.bf16.mxu0 0
  %1242 = vmatpush1.bf16.msra.mxu0 0
  %1243 = vmatprep.subr.bf16.mxu0 0
  %1244 = vmatpush1.bf16.msra.mxu0 0
  %1245 = vmatprep.subr.bf16.mxu0 0
  %1246 = vmatpush1.bf16.msra.mxu0 0
  %1247 = vmatprep.subr.bf16.mxu0 0
  %1248 = vmatpush1.bf16.msra.mxu0 0
  %1249 = vmatprep.subr.bf16.mxu0 0
  %1250 = vmatpush1.bf16.msra.mxu0 0
  %1251 = vmatprep.subr.bf16.mxu0 0
  %1252 = vmatpush1.bf16.msra.mxu0 0
  %1253 = vmatprep.subr.bf16.mxu0 0
  %1254 = vmatpush1.bf16.msra.mxu0 0
  %1255 = vmatprep.subr.bf16.mxu0 0
  %1256 = vmatpush1.bf16.msra.mxu0 0
  %1257 = vmatprep.subr.bf16.mxu0 0
  %1258 = vmatpush1.bf16.msra.mxu0 0
  %1259 = vmatprep.subr.bf16.mxu0 0
  %1260 = vmatpush1.bf16.msra.mxu0 0
  %1261 = vmatprep.subr.bf16.mxu0 0
  %1262 = vmatpush1.bf16.msra.mxu0 0
  %1263 = vmatprep.subr.bf16.mxu0 0
  %1264 = vmatpush1.bf16.msra.mxu0 0
  %1265 = vmatprep.subr.bf16.mxu0 0
  %1266 = vmatpush1.bf16.msra.mxu0 0
  %1267 = vmatprep.subr.bf16.mxu0 0
  %1268 = vmatpush1.bf16.msra.mxu0 0
  %1269 = vmatprep.mubr.bf16.mxu0 0
  %1270 = vmatmul.mubr.bf16.gmra.mrb[0].mxu0 %v1235
  %v1271 = vpop.f32.mrb[0].mxu0
  %v1272 = vadd.f32 0.0, %v1271
  %v1273 = vpop.f32.mrb[0].mxu0
  %v1274 = vpop.f32.mrb[0].mxu0
  %v1275 = vpop.f32.mrb[0].mxu0
  %1276 = vdwg.mxu0
  %v1277 = vadd.f32 %v1229, %v1272
  %v1278 = vxor.u32 %v1277, 2147483648
  %v1279 = vmul.f32 %v1278, 1.442695
  %v1280 = vpow.pop %v1279
  %v1281 = vadd.f32 %v1280, 1.0
  %v1282 = vrcp.pop %v1281
  %v1283 = vmul.f32 1.0, %v1282
  %v1284 = vtanh.pop %v1277
  %v1285 = vmul.f32 %v1283, %v1227
  %1287 = vrot.lane.b32.xlu0 %v1284, 64
  %v1288 = vpop.permute.xlu0 %1287
  %v1290 = vmul.f32 %v1283, %v1288
  %1292 = vrot.lane.b32.xlu0 %v1290, 32
  %v1293 = vpop.permute.xlu0 %1292
  %v1295 = vadd.f32 %v1285, %v1293
  %v1296 = vtanh.pop %v1295
  %1298 = vrot.lane.b32.xlu0 %v1296, 64
  %v1299 = vpop.permute.xlu0 %1298
  %v1301 = vmul.f32 %v1283, %v1299
  %s1302 = sadd.s32 %s33, 14
  %v1303 = vstv %s1302
  %vm1304 = vcmp.lt.s32.totalorder %v1303, %v32
  %v1305 = vsel %vm1304, 1, 0
  %1306 = vset.pattern.permute.xlu0 0
  %1307 = vperm.xlu0 %1306, %v1305
  %v1308 = vpop.permute.xlu0 %1307
  %vm1309 = vcmp.eq.s32.totalorder %v1308, 1
  %v1310 = vsel %vm1309, %v1301, %v1226
  %v1311 = vsel %vm1309, %v1295, %v1227
  %s1312 = scalar_lea.vmem %s1, 120
  %v1313 = vld [vmem:[%s1312] sm:$0xff]
  %v1314 = vpack.c.bf16 %v1310, %v1310
  %1316 = vrot.lane.b32.xlu0 %v1314, 32
  %v1317 = vpop.permute.xlu0 %1316
  %v1319 = vsel %vm50, %v1317, 0
  %1321 = vmatprep.subr.bf16.mxu0 0
  %1322 = vmatpush1.bf16.msra.mxu0 %v46
  %1323 = vmatprep.subr.bf16.mxu0 0
  %1324 = vmatpush1.bf16.msra.mxu0 %v47
  %1325 = vmatprep.subr.bf16.mxu0 0
  %1326 = vmatpush1.bf16.msra.mxu0 0
  %1327 = vmatprep.subr.bf16.mxu0 0
  %1328 = vmatpush1.bf16.msra.mxu0 0
  %1329 = vmatprep.subr.bf16.mxu0 0
  %1330 = vmatpush1.bf16.msra.mxu0 0
  %1331 = vmatprep.subr.bf16.mxu0 0
  %1332 = vmatpush1.bf16.msra.mxu0 0
  %1333 = vmatprep.subr.bf16.mxu0 0
  %1334 = vmatpush1.bf16.msra.mxu0 0
  %1335 = vmatprep.subr.bf16.mxu0 0
  %1336 = vmatpush1.bf16.msra.mxu0 0
  %1337 = vmatprep.subr.bf16.mxu0 0
  %1338 = vmatpush1.bf16.msra.mxu0 0
  %1339 = vmatprep.subr.bf16.mxu0 0
  %1340 = vmatpush1.bf16.msra.mxu0 0
  %1341 = vmatprep.subr.bf16.mxu0 0
  %1342 = vmatpush1.bf16.msra.mxu0 0
  %1343 = vmatprep.subr.bf16.mxu0 0
  %1344 = vmatpush1.bf16.msra.mxu0 0
  %1345 = vmatprep.subr.bf16.mxu0 0
  %1346 = vmatpush1.bf16.msra.mxu0 0
  %1347 = vmatprep.subr.bf16.mxu0 0
  %1348 = vmatpush1.bf16.msra.mxu0 0
  %1349 = vmatprep.subr.bf16.mxu0 0
  %1350 = vmatpush1.bf16.msra.mxu0 0
  %1351 = vmatprep.subr.bf16.mxu0 0
  %1352 = vmatpush1.bf16.msra.mxu0 0
  %1353 = vmatprep.mubr.bf16.mxu0 0
  %1354 = vmatmul.mubr.bf16.gmra.mrb[0].mxu0 %v1319
  %v1355 = vpop.f32.mrb[0].mxu0
  %v1356 = vadd.f32 0.0, %v1355
  %v1357 = vpop.f32.mrb[0].mxu0
  %v1358 = vpop.f32.mrb[0].mxu0
  %v1359 = vpop.f32.mrb[0].mxu0
  %1360 = vdwg.mxu0
  %v1361 = vadd.f32 %v1313, %v1356
  %v1362 = vxor.u32 %v1361, 2147483648
  %v1363 = vmul.f32 %v1362, 1.442695
  %v1364 = vpow.pop %v1363
  %v1365 = vadd.f32 %v1364, 1.0
  %v1366 = vrcp.pop %v1365
  %v1367 = vmul.f32 1.0, %v1366
  %v1368 = vtanh.pop %v1361
  %v1369 = vmul.f32 %v1367, %v1311
  %1371 = vrot.lane.b32.xlu0 %v1368, 64
  %v1372 = vpop.permute.xlu0 %1371
  %v1374 = vmul.f32 %v1367, %v1372
  %1376 = vrot.lane.b32.xlu0 %v1374, 32
  %v1377 = vpop.permute.xlu0 %1376
  %v1379 = vadd.f32 %v1369, %v1377
  %v1380 = vtanh.pop %v1379
  %1382 = vrot.lane.b32.xlu0 %v1380, 64
  %v1383 = vpop.permute.xlu0 %1382
  %v1385 = vmul.f32 %v1367, %v1383
  %s1386 = sadd.s32 %s33, 15
  %v1387 = vstv %s1386
  %vm1388 = vcmp.lt.s32.totalorder %v1387, %v32
  %v1389 = vsel %vm1388, 1, 0
  %1390 = vset.pattern.permute.xlu0 0
  %1391 = vperm.xlu0 %1390, %v1389
  %v1392 = vpop.permute.xlu0 %1391
  %vm1393 = vcmp.eq.s32.totalorder %v1392, 1
  %v1394 = vsel %vm1393, %v1385, %v1310
  %v1395 = vsel %vm1393, %v1379, %v1311
  %1397 = vrot.lane.b32.xlu0 %v1394, 32
  %v1398 = vpop.permute.xlu0 %1397
  %1400 = vst.msk [vmem:[#allocation2] sm:$0xff] %vm50, %v1398
  %1402 = vrot.lane.b32.xlu0 %v1395, 96
  %v1403 = vpop.permute.xlu0 %1402
  %1405 = vst.msk [vmem:[#allocation3] sm:$0xff] %vm50, %v1403
  // Predicated region
  $region26: #{lstm_forward.1} parent=0 // pred_check
    %p1406 = pneg %p21
  $region27: #{lstm_forward.1} parent=0 // pred_check_branch
    %1408 = sbr.rel (%p1406) target = $region29
  $region28: #{lstm_forward.1} parent=0 // pred_region
    %v1409 = vpack.c.bf16 %v1394, %v1394
    %v1410 = vld [vmem:[%s3] sm:$0xf]
    %v1411 = vld [vmem:[%s3 + $0x4] sm:$0xf]
    %v1412 = vld [vmem:[%s3 + $0x8] sm:$0xf]
    %v1413 = vld [vmem:[%s3 + $0xc] sm:$0xf]
    %v1414 = vld [vmem:[%s4] sm:$0x1]
    %v1416 = vlaneseq
    %v1417 = vshrl.u32 %v1416, 7
    %v1418 = vsub.s32 0, %v1417
    %v1419 = vrot.slane %v1414, %v1418
    %1422 = vrot.lane.b32.xlu0 %v1409, 32
    %v1423 = vpop.permute.xlu0 %1422
    %v1428 = vunpack.c.l.b16 %v1410
    %v1429 = vunpack.c.l.b16 %v1411
    %v1430 = vunpack.c.l.b16 %v1412
    %v1431 = vunpack.c.l.b16 %v1413
    %v1432 = vpack.c.b16 %v1429, %v1428
    %v1433 = vpack.c.b16 %v1431, %v1430
    %v1437 = vsel %vm50, %v1423, 0
    %1439 = vmatprep.subr.bf16.mxu0 0
    %1440 = vmatpush1.bf16.msra.mxu0 %v1432
    %1441 = vmatprep.subr.bf16.mxu0 0
    %1442 = vmatpush1.bf16.msra.mxu0 %v1433
    %1443 = vmatprep.subr.bf16.mxu0 0
    %1444 = vmatpush1.bf16.msra.mxu0 0
    %1445 = vmatprep.subr.bf16.mxu0 0
    %1446 = vmatpush1.bf16.msra.mxu0 0
    %1447 = vmatprep.subr.bf16.mxu0 0
    %1448 = vmatpush1.bf16.msra.mxu0 0
    %1449 = vmatprep.subr.bf16.mxu0 0
    %1450 = vmatpush1.bf16.msra.mxu0 0
    %1451 = vmatprep.subr.bf16.mxu0 0
    %1452 = vmatpush1.bf16.msra.mxu0 0
    %1453 = vmatprep.subr.bf16.mxu0 0
    %1454 = vmatpush1.bf16.msra.mxu0 0
    %1455 = vmatprep.subr.bf16.mxu0 0
    %1456 = vmatpush1.bf16.msra.mxu0 0
    %1457 = vmatprep.subr.bf16.mxu0 0
    %1458 = vmatpush1.bf16.msra.mxu0 0
    %1459 = vmatprep.subr.bf16.mxu0 0
    %1460 = vmatpush1.bf16.msra.mxu0 0
    %1461 = vmatprep.subr.bf16.mxu0 0
    %1462 = vmatpush1.bf16.msra.mxu0 0
    %1463 = vmatprep.subr.bf16.mxu0 0
    %1464 = vmatpush1.bf16.msra.mxu0 0
    %1465 = vmatprep.subr.bf16.mxu0 0
    %1466 = vmatpush1.bf16.msra.mxu0 0
    %1467 = vmatprep.subr.bf16.mxu0 0
    %1468 = vmatpush1.bf16.msra.mxu0 0
    %1469 = vmatprep.subr.bf16.mxu0 0
    %1470 = vmatpush1.bf16.msra.mxu0 0
    %1471 = vmatprep.mubr.bf16.mxu0 0
    %1472 = vmatmul.mubr.bf16.gmra.mrb[0].mxu0 %v1437
    %v1473 = vpop.f32.mrb[0].mxu0
    %v1474 = vadd.f32 %v1419, %v1473
    %v1475 = vpop.f32.mrb[0].mxu0
    %v1476 = vpop.f32.mrb[0].mxu0
    %v1477 = vpop.f32.mrb[0].mxu0
    %1478 = vdwg.mxu0
    %1479 = vst [vmem:[%s5] sm:$0xff] %v1474
  $region29: #{lstm_forward.1} parent=0 // pred_fallthru
    _
  // Predicated region
  $region30: #{lstm_forward.1} parent=0 // pred_check
    _
  $region31: #{lstm_forward.1} parent=0 // pred_check_branch
    %1481 = sbr.rel (0) target = $region33
  $region32: #{lstm_forward.1} parent=0 // pred_region
    _
  $region33: #{lstm_forward.1} parent=0 // pred_fallthru
    _
  // Predicated region
  $region34: #{lstm_forward.1} parent=0 // pred_check
    _
  $region35: #{lstm_forward.1} parent=0 // pred_check_branch
    %1483 = sbr.rel (0) target = $region37
  $region36: #{lstm_forward.1} parent=0 // pred_region
    _
  $region37: #{lstm_forward.1} parent=0 // pred_fallthru
    _

</llo_original>
